<compile_context>
chip_gen: v5e
topology: v5e:2x2
jax: 0.10.0
libtpu: 0.0.40
codegen_flags: <defaults>
</compile_context>

<pallas_src>
import functools

import jax
import jax.numpy as jnp
from jax.experimental import pallas as pl
from jax.experimental.pallas import tpu as pltpu


# ---------------------------------------------------------------------------
# Fused encoder kernel
# ---------------------------------------------------------------------------
def _encoder_kernel(*refs, layer_flags, N, M, compute_dtype):
    """Whole Encoder forward in a single kernel invocation.

    State layout: (C, N*M) channel-major; the N*M axis sits on the 128-wide lane
    dimension, lane index j = n*M + m.

    Per pooled layer (pool-first, factored operators):
        pool_r = state @ P_r                      # (C_in, M)  mean over rows n
        pool_c = state @ P_c                      # (C_in, N)  mean over cols m
        g      = mean(pool_r, lanes)              # (C_in, 1)  global mean
        out    = Ws^T @ state                     # self term (MXU / VPU-FMA)
               + (Wr^T @ pool_r) @ Q_r            # row pool, expanded (small matmuls)
               + (Wc^T @ pool_c) @ Q_c            # col pool, expanded
               + (b + Wb^T @ g)                   # global term folded into bias
        out    = relu(out)
    The last layer uses only the self term (axes=[] in the original module).
    The two SetPool('row'/'column', 'max', expand=True) embeddings are emitted
    lane-dense as (C_out, N*M).
    """
    it = iter(refs)
    x_ref = next(it)
    pr_ref = next(it)
    qr_ref = next(it)
    pc_ref = next(it)
    qc_ref = next(it)
    layer_refs = []
    for use_pool, _ in layer_flags:
        n_ops = 5 if use_pool else 2
        layer_refs.append(tuple(next(it) for _ in range(n_ops)))
    row_ref = next(it)
    col_ref = next(it)

    p_r = pr_ref[...]      # (NM, M): mean-over-rows pooling matrix
    q_r = qr_ref[...]      # (M, NM): row expansion (0/1)
    p_c = pc_ref[...]      # (NM, N): mean-over-columns pooling matrix
    q_c = qc_ref[...]      # (N, NM): column expansion (0/1)

    def mm(a, b):
        # f32-accumulating matmul. Tiny contraction dims (K < 8) go to the VPU as
        # broadcast-FMAs instead of a nearly-empty, drain-bound MXU pass.
        k = a.shape[1]
        if k < 8:
            a32 = a.astype(jnp.float32)
            b32 = b.astype(jnp.float32)
            acc = a32[:, 0:1] * b32[0:1, :]
            for kk in range(1, k):
                acc = acc + a32[:, kk:kk + 1] * b32[kk:kk + 1, :]
            return acc
        return jnp.dot(a.astype(compute_dtype), b.astype(compute_dtype),
                       preferred_element_type=jnp.float32)

    state = x_ref[...]
    for (use_pool, apply_relu), lrefs in zip(layer_flags, layer_refs):
        if use_pool:
            ws_ref, wr_ref, wc_ref, wb_ref, b_ref = lrefs
            pool_r = mm(state, p_r)                       # (C_in, M)
            pool_c = mm(state, p_c)                       # (C_in, N)
            g = jnp.mean(pool_r, axis=1, keepdims=True)   # (C_in, 1) global mean
            bias_eff = b_ref[...] + mm(wb_ref[...], g)    # global term -> bias add
            out = (mm(ws_ref[...], state)                 # self term
                   + mm(mm(wr_ref[...], pool_r), q_r)     # row pool, expanded
                   + mm(mm(wc_ref[...], pool_c), q_c)     # col pool, expanded
                   + bias_eff)
        else:
            ws_ref, b_ref = lrefs
            out = mm(ws_ref[...], state) + b_ref[...]
        if apply_relu:
            out = jnp.maximum(out, 0.0)
        state = out                                       # stays in VMEM between layers

    # SetPool('row'/'column', 'max', expand=True), emitted lane-dense as (C, N*M).
    c_last = state.shape[0]
    s3 = state.reshape(c_last, N, M)
    row_e = jnp.broadcast_to(jnp.max(s3, axis=1, keepdims=True), (c_last, N, M))
    col_e = jnp.broadcast_to(jnp.max(s3, axis=2, keepdims=True), (c_last, N, M))
    row_ref[...] = row_e.reshape(c_last, N * M).astype(row_ref.dtype)
    col_ref[...] = col_e.reshape(c_last, N * M).astype(col_ref.dtype)


# ---------------------------------------------------------------------------
# Wrapper
# ---------------------------------------------------------------------------
def _pool_expand_factors(N, M, dtype):
    """Factored pool / expand operators for channel-major S of shape (C, N*M):
       (S @ P_r)[:, m]       = mean over n of S[:, n*M+m]
       (X @ Q_r)[:, n*M+m]   = X[:, m]
       (S @ P_c)[:, n]       = mean over m of S[:, n*M+m]
       (X @ Q_c)[:, n*M+m]   = X[:, n]
    """
    idx = jnp.arange(N * M)
    n_id = idx // M
    m_id = idx % M
    p_r = (m_id[:, None] == jnp.arange(M)[None, :]).astype(jnp.float32) / float(N)
    q_r = (jnp.arange(M)[:, None] == m_id[None, :]).astype(jnp.float32)
    p_c = (n_id[:, None] == jnp.arange(N)[None, :]).astype(jnp.float32) / float(M)
    q_c = (jnp.arange(N)[:, None] == n_id[None, :]).astype(jnp.float32)
    return [a.astype(dtype) for a in (p_r, q_r, p_c, q_c)]


def encoder_forward(x, kernel_params, layer_flags, compute_dtype=jnp.float32):
    N, M, c_in = x.shape
    nm = N * M
    c_out = kernel_params[-1][0].shape[0]

    # Lane-dense, channel-major input; layout plumbing stays in the XLA wrapper.
    x_t = jnp.transpose(x.reshape(nm, c_in)).astype(compute_dtype)   # (C_in, NM)
    p_r, q_r, p_c, q_c = _pool_expand_factors(N, M, compute_dtype)

    operands = [x_t, p_r, q_r, p_c, q_c]
    for params, (use_pool, _) in zip(kernel_params, layer_flags):
        if use_pool:
            ws_t, wr_t, wc_t, wb_t, b_t = params
            operands += [ws_t.astype(compute_dtype), wr_t.astype(compute_dtype),
                         wc_t.astype(compute_dtype), wb_t.astype(compute_dtype),
                         b_t.astype(jnp.float32)]           # bias/relu path stays f32
        else:
            ws_t, b_t = params
            operands += [ws_t.astype(compute_dtype), b_t.astype(jnp.float32)]

    # Advisory cost hint for the XLA scheduler.
    flops = 0
    for params, (use_pool, _) in zip(kernel_params, layer_flags):
        co, ci = params[0].shape
        flops += 2 * co * ci * nm                           # self-term matmul
        if use_pool:
            flops += 2 * (ci + co) * nm * (N + M)           # factored pool + expand
    bytes_accessed = sum(int(a.size) * jnp.dtype(a.dtype).itemsize for a in operands)
    bytes_accessed += 2 * c_out * nm * 4
    cost = pl.CostEstimate(flops=int(flops), transcendentals=0,
                           bytes_accessed=int(bytes_accessed))

    kernel = functools.partial(_encoder_kernel, layer_flags=tuple(layer_flags),
                               N=N, M=M, compute_dtype=compute_dtype)

    def whole(shape):
        rank = len(shape)
        return pl.BlockSpec(shape, lambda *_: (0,) * rank)

    # Single grid step: with the (NM, NM) operators gone every operand is KB-scale,
    # so default double-buffering is irrelevant to the VMEM budget (fits the 32 MiB
    # scoped default on every chip, incl. v7x's 64 MiB VMEM).
    # TODO(synk): for production N*M, precompute pools in a reduce pass and add a
    # leading "parallel" grid axis over 128-lane chunks so v7x's 2nd TC is used.
    row_t, col_t = pl.pallas_call(
        kernel,
        out_shape=(jax.ShapeDtypeStruct((c_out, nm), jnp.float32),
                   jax.ShapeDtypeStruct((c_out, nm), jnp.float32)),
        grid=(1,),
        in_specs=[whole(a.shape) for a in operands],
        out_specs=(whole((c_out, nm)), whole((c_out, nm))),
        compiler_params=pltpu.CompilerParams(
            dimension_semantics=("arbitrary",),
            vmem_limit_bytes=32 * 1024 * 1024),
        cost_estimate=cost,
    )(*operands)

    # Back to the module's (N, M, C) convention — free layout plumbing in XLA.
    row = jnp.transpose(row_t).reshape(N, M, c_out)
    col = jnp.transpose(col_t).reshape(N, M, c_out)
    return [row, col]


# ---------------------------------------------------------------------------
# Encoder
# ---------------------------------------------------------------------------
class Encoder:
    """JAX/Pallas port of exchangable_tensor.models.Encoder
    (functions='mean', activation='relu', embedding_pool='max')."""

    def __init__(self, input_dim, units, key, activation='relu'):
        dims = [input_dim] + list(units)
        n_layers = len(dims) - 1
        self.activation = activation
        self.params = []         # reference orientation: (cin,cout) weights, (1,cout) bias
        self.kernel_params = []  # kernel operands: transposed (cout,cin) / (cout,1)
        self.layer_flags = []    # (use_pool, apply_relu) per layer
        for li in range(n_layers):
            cin, cout = dims[li], dims[li + 1]
            key, k0, k1, k2, k3, k4 = jax.random.split(key, 6)
            scale = 1.0 / float(cin) ** 0.5
            ws = jax.random.uniform(k0, (cin, cout), jnp.float32, -scale, scale)
            wr = jax.random.uniform(k1, (cin, cout), jnp.float32, -scale, scale)
            wc = jax.random.uniform(k2, (cin, cout), jnp.float32, -scale, scale)
            wb = jax.random.uniform(k3, (cin, cout), jnp.float32, -scale, scale)
            b = jax.random.uniform(k4, (1, cout), jnp.float32, -scale, scale)
            self.params.append((ws, wr, wc, wb, b))

            use_pool = li < n_layers - 1   # last MatrixLayer: axes=[] -> self term only
            apply_relu = (li < n_layers - 1) and (activation == 'relu')
            self.layer_flags.append((use_pool, apply_relu))
            if use_pool:
                self.kernel_params.append((ws.T, wr.T, wc.T, wb.T, b.T))
            else:
                self.kernel_params.append((ws.T, b.T))

    def __call__(self, x, mask=None, compute_dtype=jnp.float32):
        # TODO(synk): the mask-weighted pooling path of MatrixLayer/SetPool is not
        # reproduced; only the mask=None forward of the original module is implemented.
        del mask
        return encoder_forward(x, self.kernel_params, self.layer_flags,
                               compute_dtype=compute_dtype)


# ---------------------------------------------------------------------------
# Pure-JAX reference (for sanity check)
# ---------------------------------------------------------------------------
def _reference(x, params, activation='relu'):
    last = len(params) - 1
    state = x
    for i, (ws, wr, wc, wb, b) in enumerate(params):
        out = jnp.einsum('nmc,cd->nmd', state, ws)
        if i < last:
            out = out + jnp.einsum('mc,cd->md', state.mean(0), wr)[None]
            out = out + jnp.einsum('nc,cd->nd', state.mean(1), wc)[:, None]
            out = out + jnp.einsum('c,cd->d', state.mean((0, 1)), wb)[None, None]
        out = out + b[0][None, None]
        if i < last and activation == 'relu':
            out = jnp.maximum(out, 0.0)
        state = out
    row = jnp.broadcast_to(state.max(0, keepdims=True), state.shape)
    col = jnp.broadcast_to(state.max(1, keepdims=True), state.shape)
    return [row, col]


if __name__ == "__main__":
    key = jax.random.PRNGKey(0)
    kx, kp = jax.random.split(key)

    N, M, input_dim = 8, 16, 4          # 8 rows, 16 columns, 4 input channels (N*M = 128)
    units = [32, 32, 16]                # 3 MatrixLayers; last one has no pooled terms

    x = jax.random.normal(kx, (N, M, input_dim), jnp.float32)
    enc = Encoder(input_dim, units, kp)
    refs = _reference(x, enc.params)

    # Exact f32 path: must match the reference to 1e-4.
    outs = enc(x)
    outs = [jax.block_until_ready(o) for o in outs]
    for o, r in zip(outs, refs):
        assert o.shape == r.shape == (N, M, units[-1])
        assert jnp.allclose(o, r, atol=1e-4, rtol=1e-4)

    # bf16 MXU-input path (v6e/v7x optimization): f32 accumulation, loose tolerance
    # because the inputs themselves are rounded to bf16.
    outs_bf16 = enc(x, compute_dtype=jnp.bfloat16)
    outs_bf16 = [jax.block_until_ready(o) for o in outs_bf16]
    for o, r in zip(outs_bf16, refs):
        assert o.shape == r.shape == (N, M, units[-1])
        assert jnp.allclose(o, r, atol=1e-1, rtol=1e-1)

    print("KERNEL_OK")
</pallas_src>

<mosaic_0001>
module attributes {stable_mosaic.version = 11 : i64} {
  func.func @_encoder_kernel(%arg0: i32, %arg1: memref<4x128xf32, #tpu.memory_space<vmem>>, %arg2: memref<128x16xf32, #tpu.memory_space<vmem>>, %arg3: memref<16x128xf32, #tpu.memory_space<vmem>>, %arg4: memref<128x8xf32, #tpu.memory_space<vmem>>, %arg5: memref<8x128xf32, #tpu.memory_space<vmem>>, %arg6: memref<32x4xf32, #tpu.memory_space<vmem>>, %arg7: memref<32x4xf32, #tpu.memory_space<vmem>>, %arg8: memref<32x4xf32, #tpu.memory_space<vmem>>, %arg9: memref<32x4xf32, #tpu.memory_space<vmem>>, %arg10: memref<32x1xf32, #tpu.memory_space<vmem>>, %arg11: memref<32x32xf32, #tpu.memory_space<vmem>>, %arg12: memref<32x32xf32, #tpu.memory_space<vmem>>, %arg13: memref<32x32xf32, #tpu.memory_space<vmem>>, %arg14: memref<32x32xf32, #tpu.memory_space<vmem>>, %arg15: memref<32x1xf32, #tpu.memory_space<vmem>>, %arg16: memref<16x32xf32, #tpu.memory_space<vmem>>, %arg17: memref<16x1xf32, #tpu.memory_space<vmem>>, %arg18: memref<16x128xf32, #tpu.memory_space<vmem>>, %arg19: memref<16x128xf32, #tpu.memory_space<vmem>>) attributes {dimension_semantics = [#tpu.dimension_semantics<arbitrary>], iteration_bounds = array<i64: 1>, scalar_prefetch = 0 : i64, scratch_operands = 0 : i64, tpu.core_type = #tpu.core_type<tc>, window_params = [{pipeline_mode = #tpu.pipeline_mode<synchronous>, transform_indices = @transform_0, window_bounds = array<i64: 4, 128>}, {pipeline_mode = #tpu.pipeline_mode<synchronous>, transform_indices = @transform_1, window_bounds = array<i64: 128, 16>}, {pipeline_mode = #tpu.pipeline_mode<synchronous>, transform_indices = @transform_2, window_bounds = array<i64: 16, 128>}, {pipeline_mode = #tpu.pipeline_mode<synchronous>, transform_indices = @transform_3, window_bounds = array<i64: 128, 8>}, {pipeline_mode = #tpu.pipeline_mode<synchronous>, transform_indices = @transform_4, window_bounds = array<i64: 8, 128>}, {pipeline_mode = #tpu.pipeline_mode<synchronous>, transform_indices = @transform_5, window_bounds = array<i64: 32, 4>}, {pipeline_mode = #tpu.pipeline_mode<synchronous>, transform_indices = @transform_6, window_bounds = array<i64: 32, 4>}, {pipeline_mode = #tpu.pipeline_mode<synchronous>, transform_indices = @transform_7, window_bounds = array<i64: 32, 4>}, {pipeline_mode = #tpu.pipeline_mode<synchronous>, transform_indices = @transform_8, window_bounds = array<i64: 32, 4>}, {pipeline_mode = #tpu.pipeline_mode<synchronous>, transform_indices = @transform_9, window_bounds = array<i64: 32, 1>}, {pipeline_mode = #tpu.pipeline_mode<synchronous>, transform_indices = @transform_10, window_bounds = array<i64: 32, 32>}, {pipeline_mode = #tpu.pipeline_mode<synchronous>, transform_indices = @transform_11, window_bounds = array<i64: 32, 32>}, {pipeline_mode = #tpu.pipeline_mode<synchronous>, transform_indices = @transform_12, window_bounds = array<i64: 32, 32>}, {pipeline_mode = #tpu.pipeline_mode<synchronous>, transform_indices = @transform_13, window_bounds = array<i64: 32, 32>}, {pipeline_mode = #tpu.pipeline_mode<synchronous>, transform_indices = @transform_14, window_bounds = array<i64: 32, 1>}, {pipeline_mode = #tpu.pipeline_mode<synchronous>, transform_indices = @transform_15, window_bounds = array<i64: 16, 32>}, {pipeline_mode = #tpu.pipeline_mode<synchronous>, transform_indices = @transform_16, window_bounds = array<i64: 16, 1>}, {pipeline_mode = #tpu.pipeline_mode<synchronous>, transform_indices = @transform_17, window_bounds = array<i64: 16, 128>}, {pipeline_mode = #tpu.pipeline_mode<synchronous>, transform_indices = @transform_18, window_bounds = array<i64: 16, 128>}]} {
    %c0 = arith.constant 0 : index
    %c0_0 = arith.constant 0 : index
    %0 = vector.load %arg2[%c0, %c0_0] : memref<128x16xf32, #tpu.memory_space<vmem>>, vector<128x16xf32>
    %c0_1 = arith.constant 0 : index
    %c0_2 = arith.constant 0 : index
    %1 = vector.load %arg3[%c0_1, %c0_2] : memref<16x128xf32, #tpu.memory_space<vmem>>, vector<16x128xf32>
    %c0_3 = arith.constant 0 : index
    %c0_4 = arith.constant 0 : index
    %2 = vector.load %arg4[%c0_3, %c0_4] : memref<128x8xf32, #tpu.memory_space<vmem>>, vector<128x8xf32>
    %c0_5 = arith.constant 0 : index
    %c0_6 = arith.constant 0 : index
    %3 = vector.load %arg5[%c0_5, %c0_6] : memref<8x128xf32, #tpu.memory_space<vmem>>, vector<8x128xf32>
    %c0_7 = arith.constant 0 : index
    %c0_8 = arith.constant 0 : index
    %4 = vector.load %arg1[%c0_7, %c0_8] : memref<4x128xf32, #tpu.memory_space<vmem>>, vector<4x128xf32>
    %cst = arith.constant dense<0.000000e+00> : vector<4x16xf32>
    %5 = tpu.matmul %4, %0, %cst {dimension_numbers = #tpu.dot_dimension_numbers<[1], [0], [0], [1], [0, 0, 1, 1], [], []>} : vector<4x128xf32>, vector<128x16xf32>, vector<4x16xf32> -> vector<4x16xf32>
    %cst_9 = arith.constant dense<0.000000e+00> : vector<4x8xf32>
    %6 = tpu.matmul %4, %2, %cst_9 {dimension_numbers = #tpu.dot_dimension_numbers<[1], [0], [0], [1], [0, 0, 1, 1], [], []>} : vector<4x128xf32>, vector<128x8xf32>, vector<4x8xf32> -> vector<4x8xf32>
    %cst_10 = arith.constant dense<0.000000e+00> : vector<4xf32>
    %7 = vector.multi_reduction <add>, %5, %cst_10 [1] : vector<4x16xf32> to vector<4xf32>
    %8 = vector.shape_cast %7 : vector<4xf32> to vector<4x1xf32>
    %cst_11 = arith.constant 1.600000e+01 : f32
    %9 = vector.broadcast %cst_11 : f32 to vector<4x1xf32>
    %10 = arith.divf %8, %9 : vector<4x1xf32>
    %c0_12 = arith.constant 0 : index
    %c0_13 = arith.constant 0 : index
    %11 = vector.load %arg10[%c0_12, %c0_13] : memref<32x1xf32, #tpu.memory_space<vmem>>, vector<32x1xf32>
    %c0_14 = arith.constant 0 : index
    %c0_15 = arith.constant 0 : index
    %12 = vector.load %arg9[%c0_14, %c0_15] : memref<32x4xf32, #tpu.memory_space<vmem>>, vector<32x4xf32>
    %13 = vector.extract_strided_slice %12 {offsets = [0, 0], sizes = [32, 1], strides = [1, 1]} : vector<32x4xf32> to vector<32x1xf32>
    %14 = vector.extract_strided_slice %10 {offsets = [0, 0], sizes = [1, 1], strides = [1, 1]} : vector<4x1xf32> to vector<1x1xf32>
    %15 = vector.broadcast %14 : vector<1x1xf32> to vector<32x1xf32>
    %16 = arith.mulf %13, %15 : vector<32x1xf32>
    %17 = vector.extract_strided_slice %12 {offsets = [0, 1], sizes = [32, 1], strides = [1, 1]} : vector<32x4xf32> to vector<32x1xf32>
    %18 = vector.extract_strided_slice %10 {offsets = [1, 0], sizes = [1, 1], strides = [1, 1]} : vector<4x1xf32> to vector<1x1xf32>
    %19 = vector.broadcast %18 : vector<1x1xf32> to vector<32x1xf32>
    %20 = arith.mulf %17, %19 : vector<32x1xf32>
    %21 = arith.addf %16, %20 : vector<32x1xf32>
    %22 = vector.extract_strided_slice %12 {offsets = [0, 2], sizes = [32, 1], strides = [1, 1]} : vector<32x4xf32> to vector<32x1xf32>
    %23 = vector.extract_strided_slice %10 {offsets = [2, 0], sizes = [1, 1], strides = [1, 1]} : vector<4x1xf32> to vector<1x1xf32>
    %24 = vector.broadcast %23 : vector<1x1xf32> to vector<32x1xf32>
    %25 = arith.mulf %22, %24 : vector<32x1xf32>
    %26 = arith.addf %21, %25 : vector<32x1xf32>
    %27 = vector.extract_strided_slice %12 {offsets = [0, 3], sizes = [32, 1], strides = [1, 1]} : vector<32x4xf32> to vector<32x1xf32>
    %28 = vector.extract_strided_slice %10 {offsets = [3, 0], sizes = [1, 1], strides = [1, 1]} : vector<4x1xf32> to vector<1x1xf32>
    %29 = vector.broadcast %28 : vector<1x1xf32> to vector<32x1xf32>
    %30 = arith.mulf %27, %29 : vector<32x1xf32>
    %31 = arith.addf %26, %30 : vector<32x1xf32>
    %32 = arith.addf %11, %31 : vector<32x1xf32>
    %c0_16 = arith.constant 0 : index
    %c0_17 = arith.constant 0 : index
    %33 = vector.load %arg6[%c0_16, %c0_17] : memref<32x4xf32, #tpu.memory_space<vmem>>, vector<32x4xf32>
    %34 = vector.extract_strided_slice %33 {offsets = [0, 0], sizes = [32, 1], strides = [1, 1]} : vector<32x4xf32> to vector<32x1xf32>
    %35 = vector.extract_strided_slice %4 {offsets = [0, 0], sizes = [1, 128], strides = [1, 1]} : vector<4x128xf32> to vector<1x128xf32>
    %36 = vector.broadcast %34 : vector<32x1xf32> to vector<32x128xf32>
    %37 = vector.broadcast %35 : vector<1x128xf32> to vector<32x128xf32>
    %38 = arith.mulf %36, %37 : vector<32x128xf32>
    %39 = vector.extract_strided_slice %33 {offsets = [0, 1], sizes = [32, 1], strides = [1, 1]} : vector<32x4xf32> to vector<32x1xf32>
    %40 = vector.extract_strided_slice %4 {offsets = [1, 0], sizes = [1, 128], strides = [1, 1]} : vector<4x128xf32> to vector<1x128xf32>
    %41 = vector.broadcast %39 : vector<32x1xf32> to vector<32x128xf32>
    %42 = vector.broadcast %40 : vector<1x128xf32> to vector<32x128xf32>
    %43 = arith.mulf %41, %42 : vector<32x128xf32>
    %44 = arith.addf %38, %43 : vector<32x128xf32>
    %45 = vector.extract_strided_slice %33 {offsets = [0, 2], sizes = [32, 1], strides = [1, 1]} : vector<32x4xf32> to vector<32x1xf32>
    %46 = vector.extract_strided_slice %4 {offsets = [2, 0], sizes = [1, 128], strides = [1, 1]} : vector<4x128xf32> to vector<1x128xf32>
    %47 = vector.broadcast %45 : vector<32x1xf32> to vector<32x128xf32>
    %48 = vector.broadcast %46 : vector<1x128xf32> to vector<32x128xf32>
    %49 = arith.mulf %47, %48 : vector<32x128xf32>
    %50 = arith.addf %44, %49 : vector<32x128xf32>
    %51 = vector.extract_strided_slice %33 {offsets = [0, 3], sizes = [32, 1], strides = [1, 1]} : vector<32x4xf32> to vector<32x1xf32>
    %52 = vector.extract_strided_slice %4 {offsets = [3, 0], sizes = [1, 128], strides = [1, 1]} : vector<4x128xf32> to vector<1x128xf32>
    %53 = vector.broadcast %51 : vector<32x1xf32> to vector<32x128xf32>
    %54 = vector.broadcast %52 : vector<1x128xf32> to vector<32x128xf32>
    %55 = arith.mulf %53, %54 : vector<32x128xf32>
    %56 = arith.addf %50, %55 : vector<32x128xf32>
    %c0_18 = arith.constant 0 : index
    %c0_19 = arith.constant 0 : index
    %57 = vector.load %arg7[%c0_18, %c0_19] : memref<32x4xf32, #tpu.memory_space<vmem>>, vector<32x4xf32>
    %58 = vector.extract_strided_slice %57 {offsets = [0, 0], sizes = [32, 1], strides = [1, 1]} : vector<32x4xf32> to vector<32x1xf32>
    %59 = vector.extract_strided_slice %5 {offsets = [0, 0], sizes = [1, 16], strides = [1, 1]} : vector<4x16xf32> to vector<1x16xf32>
    %60 = vector.broadcast %58 : vector<32x1xf32> to vector<32x16xf32>
    %61 = vector.broadcast %59 : vector<1x16xf32> to vector<32x16xf32>
    %62 = arith.mulf %60, %61 : vector<32x16xf32>
    %63 = vector.extract_strided_slice %57 {offsets = [0, 1], sizes = [32, 1], strides = [1, 1]} : vector<32x4xf32> to vector<32x1xf32>
    %64 = vector.extract_strided_slice %5 {offsets = [1, 0], sizes = [1, 16], strides = [1, 1]} : vector<4x16xf32> to vector<1x16xf32>
    %65 = vector.broadcast %63 : vector<32x1xf32> to vector<32x16xf32>
    %66 = vector.broadcast %64 : vector<1x16xf32> to vector<32x16xf32>
    %67 = arith.mulf %65, %66 : vector<32x16xf32>
    %68 = arith.addf %62, %67 : vector<32x16xf32>
    %69 = vector.extract_strided_slice %57 {offsets = [0, 2], sizes = [32, 1], strides = [1, 1]} : vector<32x4xf32> to vector<32x1xf32>
    %70 = vector.extract_strided_slice %5 {offsets = [2, 0], sizes = [1, 16], strides = [1, 1]} : vector<4x16xf32> to vector<1x16xf32>
    %71 = vector.broadcast %69 : vector<32x1xf32> to vector<32x16xf32>
    %72 = vector.broadcast %70 : vector<1x16xf32> to vector<32x16xf32>
    %73 = arith.mulf %71, %72 : vector<32x16xf32>
    %74 = arith.addf %68, %73 : vector<32x16xf32>
    %75 = vector.extract_strided_slice %57 {offsets = [0, 3], sizes = [32, 1], strides = [1, 1]} : vector<32x4xf32> to vector<32x1xf32>
    %76 = vector.extract_strided_slice %5 {offsets = [3, 0], sizes = [1, 16], strides = [1, 1]} : vector<4x16xf32> to vector<1x16xf32>
    %77 = vector.broadcast %75 : vector<32x1xf32> to vector<32x16xf32>
    %78 = vector.broadcast %76 : vector<1x16xf32> to vector<32x16xf32>
    %79 = arith.mulf %77, %78 : vector<32x16xf32>
    %80 = arith.addf %74, %79 : vector<32x16xf32>
    %cst_20 = arith.constant dense<0.000000e+00> : vector<32x128xf32>
    %81 = tpu.matmul %80, %1, %cst_20 {dimension_numbers = #tpu.dot_dimension_numbers<[1], [0], [0], [1], [0, 0, 1, 1], [], []>} : vector<32x16xf32>, vector<16x128xf32>, vector<32x128xf32> -> vector<32x128xf32>
    %82 = arith.addf %56, %81 : vector<32x128xf32>
    %c0_21 = arith.constant 0 : index
    %c0_22 = arith.constant 0 : index
    %83 = vector.load %arg8[%c0_21, %c0_22] : memref<32x4xf32, #tpu.memory_space<vmem>>, vector<32x4xf32>
    %84 = vector.extract_strided_slice %83 {offsets = [0, 0], sizes = [32, 1], strides = [1, 1]} : vector<32x4xf32> to vector<32x1xf32>
    %85 = vector.extract_strided_slice %6 {offsets = [0, 0], sizes = [1, 8], strides = [1, 1]} : vector<4x8xf32> to vector<1x8xf32>
    %86 = vector.broadcast %84 : vector<32x1xf32> to vector<32x8xf32>
    %87 = vector.broadcast %85 : vector<1x8xf32> to vector<32x8xf32>
    %88 = arith.mulf %86, %87 : vector<32x8xf32>
    %89 = vector.extract_strided_slice %83 {offsets = [0, 1], sizes = [32, 1], strides = [1, 1]} : vector<32x4xf32> to vector<32x1xf32>
    %90 = vector.extract_strided_slice %6 {offsets = [1, 0], sizes = [1, 8], strides = [1, 1]} : vector<4x8xf32> to vector<1x8xf32>
    %91 = vector.broadcast %89 : vector<32x1xf32> to vector<32x8xf32>
    %92 = vector.broadcast %90 : vector<1x8xf32> to vector<32x8xf32>
    %93 = arith.mulf %91, %92 : vector<32x8xf32>
    %94 = arith.addf %88, %93 : vector<32x8xf32>
    %95 = vector.extract_strided_slice %83 {offsets = [0, 2], sizes = [32, 1], strides = [1, 1]} : vector<32x4xf32> to vector<32x1xf32>
    %96 = vector.extract_strided_slice %6 {offsets = [2, 0], sizes = [1, 8], strides = [1, 1]} : vector<4x8xf32> to vector<1x8xf32>
    %97 = vector.broadcast %95 : vector<32x1xf32> to vector<32x8xf32>
    %98 = vector.broadcast %96 : vector<1x8xf32> to vector<32x8xf32>
    %99 = arith.mulf %97, %98 : vector<32x8xf32>
    %100 = arith.addf %94, %99 : vector<32x8xf32>
    %101 = vector.extract_strided_slice %83 {offsets = [0, 3], sizes = [32, 1], strides = [1, 1]} : vector<32x4xf32> to vector<32x1xf32>
    %102 = vector.extract_strided_slice %6 {offsets = [3, 0], sizes = [1, 8], strides = [1, 1]} : vector<4x8xf32> to vector<1x8xf32>
    %103 = vector.broadcast %101 : vector<32x1xf32> to vector<32x8xf32>
    %104 = vector.broadcast %102 : vector<1x8xf32> to vector<32x8xf32>
    %105 = arith.mulf %103, %104 : vector<32x8xf32>
    %106 = arith.addf %100, %105 : vector<32x8xf32>
    %cst_23 = arith.constant dense<0.000000e+00> : vector<32x128xf32>
    %107 = tpu.matmul %106, %3, %cst_23 {dimension_numbers = #tpu.dot_dimension_numbers<[1], [0], [0], [1], [0, 0, 1, 1], [], []>} : vector<32x8xf32>, vector<8x128xf32>, vector<32x128xf32> -> vector<32x128xf32>
    %108 = arith.addf %82, %107 : vector<32x128xf32>
    %109 = vector.broadcast %32 : vector<32x1xf32> to vector<32x128xf32>
    %110 = arith.addf %108, %109 : vector<32x128xf32>
    %cst_24 = arith.constant 0.000000e+00 : f32
    %111 = vector.broadcast %cst_24 : f32 to vector<32x128xf32>
    %112 = arith.maximumf %110, %111 : vector<32x128xf32>
    %cst_25 = arith.constant dense<0.000000e+00> : vector<32x16xf32>
    %113 = tpu.matmul %112, %0, %cst_25 {dimension_numbers = #tpu.dot_dimension_numbers<[1], [0], [0], [1], [0, 0, 1, 1], [], []>} : vector<32x128xf32>, vector<128x16xf32>, vector<32x16xf32> -> vector<32x16xf32>
    %cst_26 = arith.constant dense<0.000000e+00> : vector<32x8xf32>
    %114 = tpu.matmul %112, %2, %cst_26 {dimension_numbers = #tpu.dot_dimension_numbers<[1], [0], [0], [1], [0, 0, 1, 1], [], []>} : vector<32x128xf32>, vector<128x8xf32>, vector<32x8xf32> -> vector<32x8xf32>
    %cst_27 = arith.constant dense<0.000000e+00> : vector<32xf32>
    %115 = vector.multi_reduction <add>, %113, %cst_27 [1] : vector<32x16xf32> to vector<32xf32>
    %116 = vector.shape_cast %115 : vector<32xf32> to vector<32x1xf32>
    %cst_28 = arith.constant 1.600000e+01 : f32
    %117 = vector.broadcast %cst_28 : f32 to vector<32x1xf32>
    %118 = arith.divf %116, %117 : vector<32x1xf32>
    %c0_29 = arith.constant 0 : index
    %c0_30 = arith.constant 0 : index
    %119 = vector.load %arg15[%c0_29, %c0_30] : memref<32x1xf32, #tpu.memory_space<vmem>>, vector<32x1xf32>
    %c0_31 = arith.constant 0 : index
    %c0_32 = arith.constant 0 : index
    %120 = vector.load %arg14[%c0_31, %c0_32] : memref<32x32xf32, #tpu.memory_space<vmem>>, vector<32x32xf32>
    %cst_33 = arith.constant dense<0.000000e+00> : vector<32x1xf32>
    %121 = tpu.matmul %120, %118, %cst_33 {dimension_numbers = #tpu.dot_dimension_numbers<[1], [0], [0], [1], [0, 0, 1, 1], [], []>} : vector<32x32xf32>, vector<32x1xf32>, vector<32x1xf32> -> vector<32x1xf32>
    %122 = arith.addf %119, %121 : vector<32x1xf32>
    %c0_34 = arith.constant 0 : index
    %c0_35 = arith.constant 0 : index
    %123 = vector.load %arg11[%c0_34, %c0_35] : memref<32x32xf32, #tpu.memory_space<vmem>>, vector<32x32xf32>
    %cst_36 = arith.constant dense<0.000000e+00> : vector<32x128xf32>
    %124 = tpu.matmul %123, %112, %cst_36 {dimension_numbers = #tpu.dot_dimension_numbers<[1], [0], [0], [1], [0, 0, 1, 1], [], []>} : vector<32x32xf32>, vector<32x128xf32>, vector<32x128xf32> -> vector<32x128xf32>
    %c0_37 = arith.constant 0 : index
    %c0_38 = arith.constant 0 : index
    %125 = vector.load %arg12[%c0_37, %c0_38] : memref<32x32xf32, #tpu.memory_space<vmem>>, vector<32x32xf32>
    %cst_39 = arith.constant dense<0.000000e+00> : vector<32x16xf32>
    %126 = tpu.matmul %125, %113, %cst_39 {dimension_numbers = #tpu.dot_dimension_numbers<[1], [0], [0], [1], [0, 0, 1, 1], [], []>} : vector<32x32xf32>, vector<32x16xf32>, vector<32x16xf32> -> vector<32x16xf32>
    %cst_40 = arith.constant dense<0.000000e+00> : vector<32x128xf32>
    %127 = tpu.matmul %126, %1, %cst_40 {dimension_numbers = #tpu.dot_dimension_numbers<[1], [0], [0], [1], [0, 0, 1, 1], [], []>} : vector<32x16xf32>, vector<16x128xf32>, vector<32x128xf32> -> vector<32x128xf32>
    %128 = arith.addf %124, %127 : vector<32x128xf32>
    %c0_41 = arith.constant 0 : index
    %c0_42 = arith.constant 0 : index
    %129 = vector.load %arg13[%c0_41, %c0_42] : memref<32x32xf32, #tpu.memory_space<vmem>>, vector<32x32xf32>
    %cst_43 = arith.constant dense<0.000000e+00> : vector<32x8xf32>
    %130 = tpu.matmul %129, %114, %cst_43 {dimension_numbers = #tpu.dot_dimension_numbers<[1], [0], [0], [1], [0, 0, 1, 1], [], []>} : vector<32x32xf32>, vector<32x8xf32>, vector<32x8xf32> -> vector<32x8xf32>
    %cst_44 = arith.constant dense<0.000000e+00> : vector<32x128xf32>
    %131 = tpu.matmul %130, %3, %cst_44 {dimension_numbers = #tpu.dot_dimension_numbers<[1], [0], [0], [1], [0, 0, 1, 1], [], []>} : vector<32x8xf32>, vector<8x128xf32>, vector<32x128xf32> -> vector<32x128xf32>
    %132 = arith.addf %128, %131 : vector<32x128xf32>
    %133 = vector.broadcast %122 : vector<32x1xf32> to vector<32x128xf32>
    %134 = arith.addf %132, %133 : vector<32x128xf32>
    %cst_45 = arith.constant 0.000000e+00 : f32
    %135 = vector.broadcast %cst_45 : f32 to vector<32x128xf32>
    %136 = arith.maximumf %134, %135 : vector<32x128xf32>
    %c0_46 = arith.constant 0 : index
    %c0_47 = arith.constant 0 : index
    %137 = vector.load %arg16[%c0_46, %c0_47] : memref<16x32xf32, #tpu.memory_space<vmem>>, vector<16x32xf32>
    %cst_48 = arith.constant dense<0.000000e+00> : vector<16x128xf32>
    %138 = tpu.matmul %137, %136, %cst_48 {dimension_numbers = #tpu.dot_dimension_numbers<[1], [0], [0], [1], [0, 0, 1, 1], [], []>} : vector<16x32xf32>, vector<32x128xf32>, vector<16x128xf32> -> vector<16x128xf32>
    %c0_49 = arith.constant 0 : index
    %c0_50 = arith.constant 0 : index
    %139 = vector.load %arg17[%c0_49, %c0_50] : memref<16x1xf32, #tpu.memory_space<vmem>>, vector<16x1xf32>
    %140 = vector.broadcast %139 : vector<16x1xf32> to vector<16x128xf32>
    %141 = arith.addf %138, %140 : vector<16x128xf32>
    %142 = vector.shape_cast %141 : vector<16x128xf32> to vector<16x8x16xf32>
    %cst_51 = arith.constant dense<0xFF800000> : vector<16x16xf32>
    %143 = vector.multi_reduction <maximumf>, %142, %cst_51 [1] : vector<16x8x16xf32> to vector<16x16xf32>
    %144 = vector.shape_cast %143 : vector<16x16xf32> to vector<16x1x16xf32>
    %145 = vector.shape_cast %144 : vector<16x1x16xf32> to vector<16x1x16xf32>
    %146 = vector.broadcast %145 : vector<16x1x16xf32> to vector<16x8x16xf32>
    %cst_52 = arith.constant dense<0xFF800000> : vector<16x8xf32>
    %147 = vector.multi_reduction <maximumf>, %142, %cst_52 [2] : vector<16x8x16xf32> to vector<16x8xf32>
    %148 = vector.shape_cast %147 : vector<16x8xf32> to vector<16x8x1xf32>
    %149 = vector.shape_cast %148 : vector<16x8x1xf32> to vector<16x8x1xf32>
    %150 = vector.broadcast %149 : vector<16x8x1xf32> to vector<16x8x16xf32>
    %151 = vector.shape_cast %146 : vector<16x8x16xf32> to vector<16x128xf32>
    %c0_53 = arith.constant 0 : index
    %c0_54 = arith.constant 0 : index
    %152 = vector.load %arg18[%c0_53, %c0_54] : memref<16x128xf32, #tpu.memory_space<vmem>>, vector<16x128xf32>
    tpu.vector_store %arg18[%c0_53, %c0_54], %151 {strides = array<i32>} : memref<16x128xf32, #tpu.memory_space<vmem>>, vector<16x128xf32>,
    %153 = vector.shape_cast %150 : vector<16x8x16xf32> to vector<16x128xf32>
    %c0_55 = arith.constant 0 : index
    %c0_56 = arith.constant 0 : index
    %154 = vector.load %arg19[%c0_55, %c0_56] : memref<16x128xf32, #tpu.memory_space<vmem>>, vector<16x128xf32>
    tpu.vector_store %arg19[%c0_55, %c0_56], %153 {strides = array<i32>} : memref<16x128xf32, #tpu.memory_space<vmem>>, vector<16x128xf32>,
    return
  }
  func.func @transform_0(%arg0: i32) -> (i32, i32) {
    %c0_i32 = arith.constant 0 : i32
    %c0_i32_0 = arith.constant 0 : i32
    %c0_i32_1 = arith.constant 0 : i32
    return %c0_i32, %c0_i32_0 : i32, i32
  }
  func.func @transform_1(%arg0: i32) -> (i32, i32) {
    %c0_i32 = arith.constant 0 : i32
    %c0_i32_0 = arith.constant 0 : i32
    %c0_i32_1 = arith.constant 0 : i32
    return %c0_i32, %c0_i32_0 : i32, i32
  }
  func.func @transform_2(%arg0: i32) -> (i32, i32) {
    %c0_i32 = arith.constant 0 : i32
    %c0_i32_0 = arith.constant 0 : i32
    %c0_i32_1 = arith.constant 0 : i32
    return %c0_i32, %c0_i32_0 : i32, i32
  }
  func.func @transform_3(%arg0: i32) -> (i32, i32) {
    %c0_i32 = arith.constant 0 : i32
    %c0_i32_0 = arith.constant 0 : i32
    %c0_i32_1 = arith.constant 0 : i32
    return %c0_i32, %c0_i32_0 : i32, i32
  }
  func.func @transform_4(%arg0: i32) -> (i32, i32) {
    %c0_i32 = arith.constant 0 : i32
    %c0_i32_0 = arith.constant 0 : i32
    %c0_i32_1 = arith.constant 0 : i32
    return %c0_i32, %c0_i32_0 : i32, i32
  }
  func.func @transform_5(%arg0: i32) -> (i32, i32) {
    %c0_i32 = arith.constant 0 : i32
    %c0_i32_0 = arith.constant 0 : i32
    %c0_i32_1 = arith.constant 0 : i32
    return %c0_i32, %c0_i32_0 : i32, i32
  }
  func.func @transform_6(%arg0: i32) -> (i32, i32) {
    %c0_i32 = arith.constant 0 : i32
    %c0_i32_0 = arith.constant 0 : i32
    %c0_i32_1 = arith.constant 0 : i32
    return %c0_i32, %c0_i32_0 : i32, i32
  }
  func.func @transform_7(%arg0: i32) -> (i32, i32) {
    %c0_i32 = arith.constant 0 : i32
    %c0_i32_0 = arith.constant 0 : i32
    %c0_i32_1 = arith.constant 0 : i32
    return %c0_i32, %c0_i32_0 : i32, i32
  }
  func.func @transform_8(%arg0: i32) -> (i32, i32) {
    %c0_i32 = arith.constant 0 : i32
    %c0_i32_0 = arith.constant 0 : i32
    %c0_i32_1 = arith.constant 0 : i32
    return %c0_i32, %c0_i32_0 : i32, i32
  }
  func.func @transform_9(%arg0: i32) -> (i32, i32) {
    %c0_i32 = arith.constant 0 : i32
    %c0_i32_0 = arith.constant 0 : i32
    %c0_i32_1 = arith.constant 0 : i32
    return %c0_i32, %c0_i32_0 : i32, i32
  }
  func.func @transform_10(%arg0: i32) -> (i32, i32) {
    %c0_i32 = arith.constant 0 : i32
    %c0_i32_0 = arith.constant 0 : i32
    %c0_i32_1 = arith.constant 0 : i32
    return %c0_i32, %c0_i32_0 : i32, i32
  }
  func.func @transform_11(%arg0: i32) -> (i32, i32) {
    %c0_i32 = arith.constant 0 : i32
    %c0_i32_0 = arith.constant 0 : i32
    %c0_i32_1 = arith.constant 0 : i32
    return %c0_i32, %c0_i32_0 : i32, i32
  }
  func.func @transform_12(%arg0: i32) -> (i32, i32) {
    %c0_i32 = arith.constant 0 : i32
    %c0_i32_0 = arith.constant 0 : i32
    %c0_i32_1 = arith.constant 0 : i32
    return %c0_i32, %c0_i32_0 : i32, i32
  }
  func.func @transform_13(%arg0: i32) -> (i32, i32) {
    %c0_i32 = arith.constant 0 : i32
    %c0_i32_0 = arith.constant 0 : i32
    %c0_i32_1 = arith.constant 0 : i32
    return %c0_i32, %c0_i32_0 : i32, i32
  }
  func.func @transform_14(%arg0: i32) -> (i32, i32) {
    %c0_i32 = arith.constant 0 : i32
    %c0_i32_0 = arith.constant 0 : i32
    %c0_i32_1 = arith.constant 0 : i32
    return %c0_i32, %c0_i32_0 : i32, i32
  }
  func.func @transform_15(%arg0: i32) -> (i32, i32) {
    %c0_i32 = arith.constant 0 : i32
    %c0_i32_0 = arith.constant 0 : i32
    %c0_i32_1 = arith.constant 0 : i32
    return %c0_i32, %c0_i32_0 : i32, i32
  }
  func.func @transform_16(%arg0: i32) -> (i32, i32) {
    %c0_i32 = arith.constant 0 : i32
    %c0_i32_0 = arith.constant 0 : i32
    %c0_i32_1 = arith.constant 0 : i32
    return %c0_i32, %c0_i32_0 : i32, i32
  }
  func.func @transform_17(%arg0: i32) -> (i32, i32) {
    %c0_i32 = arith.constant 0 : i32
    %c0_i32_0 = arith.constant 0 : i32
    %c0_i32_1 = arith.constant 0 : i32
    return %c0_i32, %c0_i32_0 : i32, i32
  }
  func.func @transform_18(%arg0: i32) -> (i32, i32) {
    %c0_i32 = arith.constant 0 : i32
    %c0_i32_0 = arith.constant 0 : i32
    %c0_i32_1 = arith.constant 0 : i32
    return %c0_i32, %c0_i32_0 : i32, i32
  }
}

</mosaic_0001>

<llo_original>
// kernel: tpu_custom_call.1
$region0: #{tpu_custom_call.1}
  #allocation0 [shape = 'u32[]', space=smem, size = 0x4, offset = 0x4, fixed_abs, tag = 'smem constant byte address 0x4 - core index']
  #allocation1 [shape = 'u32[72,128]{1,0:T(1,128)}', space=vmem, size = 0x9000, scoped, tag = 'internal scratch']
  %s0 = inlined_call_operand.vmem [shape: f32[4,128], index: 0, kind: input, shape index: {}]
  %s1 = inlined_call_operand.vmem [shape: f32[128,16], index: 1, kind: input, shape index: {}]
  %s2 = inlined_call_operand.vmem [shape: f32[16,128], index: 2, kind: input, shape index: {}]
  %s3 = inlined_call_operand.vmem [shape: f32[128,8], index: 3, kind: input, shape index: {}]
  %s4 = inlined_call_operand.vmem [shape: f32[8,128], index: 4, kind: input, shape index: {}]
  %s5 = inlined_call_operand.vmem [shape: f32[32,4], index: 5, kind: input, shape index: {}]
  %s6 = inlined_call_operand.vmem [shape: f32[32,4], index: 6, kind: input, shape index: {}]
  %s7 = inlined_call_operand.vmem [shape: f32[32,4], index: 7, kind: input, shape index: {}]
  %s8 = inlined_call_operand.vmem [shape: f32[32,4], index: 8, kind: input, shape index: {}]
  %s9 = inlined_call_operand.vmem [shape: f32[32,1], index: 9, kind: input, shape index: {}]
  %s10 = inlined_call_operand.vmem [shape: f32[32,32], index: 10, kind: input, shape index: {}]
  %s11 = inlined_call_operand.vmem [shape: f32[32,32], index: 11, kind: input, shape index: {}]
  %s12 = inlined_call_operand.vmem [shape: f32[32,32], index: 12, kind: input, shape index: {}]
  %s13 = inlined_call_operand.vmem [shape: f32[32,32], index: 13, kind: input, shape index: {}]
  %s14 = inlined_call_operand.vmem [shape: f32[32,1], index: 14, kind: input, shape index: {}]
  %s15 = inlined_call_operand.vmem [shape: f32[16,32], index: 15, kind: input, shape index: {}]
  %s16 = inlined_call_operand.vmem [shape: f32[16,1], index: 16, kind: input, shape index: {}]
  %s17 = inlined_call_operand.hbm [shape: f32[16,128], index: 17, kind: output, shape index: {0}]
  %s18 = inlined_call_operand.hbm [shape: f32[16,128], index: 18, kind: output, shape index: {1}]
  %19 = xla_tuple %s17, %s18
  %s20 = sld [smem:[#allocation0]]
  $region86: #{tpu_custom_call.1} parent=0
    _
  %s22 = ssub.s32 1, %s20
  %s23 = scalar_select 0, %s22, %s20
  $region1: #{tpu_custom_call.1} parent=0
    #allocation2 [shape = 'u8[8192]{0}', space=vmem, size = 0x2000, scoped, tag = 'output window, operand 0, single buffered']
    #allocation3 [shape = 's32[1]{0}', space=sflag, size = 0x4, scoped, tag = 'scoped memory for tpu_custom_call.1']
    #allocation4 [shape = 'u8[8192]{0}', space=vmem, size = 0x2000, scoped, tag = 'output window, operand 1, single buffered']
    #allocation5 [shape = 's32[1]{0}', space=sflag, size = 0x4, scoped, tag = 'scoped memory for tpu_custom_call.1']
    %24 = vsyncpa [#allocation3], 0
    %25 = vsyncpa [#allocation5], 0
    // Predicated region
    $region2: #{tpu_custom_call.1} parent=1 // pred_check
      _
    $region3: #{tpu_custom_call.1} parent=1 // pred_check_branch
      %27 = sbr.rel (0) target = $region5
    $region4: #{tpu_custom_call.1} parent=1 // pred_region
      _
    $region5: #{tpu_custom_call.1} parent=1 // pred_fallthru
      _
    // Predicated region
    $region6: #{tpu_custom_call.1} parent=1 // pred_check
      _
    $region7: #{tpu_custom_call.1} parent=1 // pred_check_branch
      %29 = sbr.rel (0) target = $region9
    $region8: #{tpu_custom_call.1} parent=1 // pred_region
      _
    $region9: #{tpu_custom_call.1} parent=1 // pred_fallthru
      _
    // Predicated region
    $region10: #{tpu_custom_call.1} parent=1 // pred_check
      _
    $region11: #{tpu_custom_call.1} parent=1 // pred_check_branch
      %31 = sbr.rel (0) target = $region13
    $region12: #{tpu_custom_call.1} parent=1 // pred_region
      _
    $region13: #{tpu_custom_call.1} parent=1 // pred_fallthru
      _
    // Predicated region
    $region14: #{tpu_custom_call.1} parent=1 // pred_check
      _
    $region15: #{tpu_custom_call.1} parent=1 // pred_check_branch
      %33 = sbr.rel (0) target = $region17
    $region16: #{tpu_custom_call.1} parent=1 // pred_region
      _
    $region17: #{tpu_custom_call.1} parent=1 // pred_fallthru
      _
    // Predicated region
    $region18: #{tpu_custom_call.1} parent=1 // pred_check
      _
    $region19: #{tpu_custom_call.1} parent=1 // pred_check_branch
      %35 = sbr.rel (0) target = $region21
    $region20: #{tpu_custom_call.1} parent=1 // pred_region
      _
    $region21: #{tpu_custom_call.1} parent=1 // pred_fallthru
      _
    // Predicated region
    $region22: #{tpu_custom_call.1} parent=1 // pred_check
      _
    $region23: #{tpu_custom_call.1} parent=1 // pred_check_branch
      %37 = sbr.rel (0) target = $region25
    $region24: #{tpu_custom_call.1} parent=1 // pred_region
      _
    $region25: #{tpu_custom_call.1} parent=1 // pred_fallthru
      _
    // Predicated region
    $region26: #{tpu_custom_call.1} parent=1 // pred_check
      _
    $region27: #{tpu_custom_call.1} parent=1 // pred_check_branch
      %39 = sbr.rel (0) target = $region29
    $region28: #{tpu_custom_call.1} parent=1 // pred_region
      _
    $region29: #{tpu_custom_call.1} parent=1 // pred_fallthru
      _
    // Predicated region
    $region30: #{tpu_custom_call.1} parent=1 // pred_check
      _
    $region31: #{tpu_custom_call.1} parent=1 // pred_check_branch
      %41 = sbr.rel (0) target = $region33
    $region32: #{tpu_custom_call.1} parent=1 // pred_region
      _
    $region33: #{tpu_custom_call.1} parent=1 // pred_fallthru
      _
    // Predicated region
    $region34: #{tpu_custom_call.1} parent=1 // pred_check
      _
    $region35: #{tpu_custom_call.1} parent=1 // pred_check_branch
      %43 = sbr.rel (0) target = $region37
    $region36: #{tpu_custom_call.1} parent=1 // pred_region
      _
    $region37: #{tpu_custom_call.1} parent=1 // pred_fallthru
      _
    // Predicated region
    $region38: #{tpu_custom_call.1} parent=1 // pred_check
      _
    $region39: #{tpu_custom_call.1} parent=1 // pred_check_branch
      %45 = sbr.rel (0) target = $region41
    $region40: #{tpu_custom_call.1} parent=1 // pred_region
      _
    $region41: #{tpu_custom_call.1} parent=1 // pred_fallthru
      _
    // Predicated region
    $region42: #{tpu_custom_call.1} parent=1 // pred_check
      _
    $region43: #{tpu_custom_call.1} parent=1 // pred_check_branch
      %47 = sbr.rel (0) target = $region45
    $region44: #{tpu_custom_call.1} parent=1 // pred_region
      _
    $region45: #{tpu_custom_call.1} parent=1 // pred_fallthru
      _
    // Predicated region
    $region46: #{tpu_custom_call.1} parent=1 // pred_check
      _
    $region47: #{tpu_custom_call.1} parent=1 // pred_check_branch
      %49 = sbr.rel (0) target = $region49
    $region48: #{tpu_custom_call.1} parent=1 // pred_region
      _
    $region49: #{tpu_custom_call.1} parent=1 // pred_fallthru
      _
    // Predicated region
    $region50: #{tpu_custom_call.1} parent=1 // pred_check
      _
    $region51: #{tpu_custom_call.1} parent=1 // pred_check_branch
      %51 = sbr.rel (0) target = $region53
    $region52: #{tpu_custom_call.1} parent=1 // pred_region
      _
    $region53: #{tpu_custom_call.1} parent=1 // pred_fallthru
      _
    // Predicated region
    $region54: #{tpu_custom_call.1} parent=1 // pred_check
      _
    $region55: #{tpu_custom_call.1} parent=1 // pred_check_branch
      %53 = sbr.rel (0) target = $region57
    $region56: #{tpu_custom_call.1} parent=1 // pred_region
      _
    $region57: #{tpu_custom_call.1} parent=1 // pred_fallthru
      _
    // Predicated region
    $region58: #{tpu_custom_call.1} parent=1 // pred_check
      _
    $region59: #{tpu_custom_call.1} parent=1 // pred_check_branch
      %55 = sbr.rel (0) target = $region61
    $region60: #{tpu_custom_call.1} parent=1 // pred_region
      _
    $region61: #{tpu_custom_call.1} parent=1 // pred_fallthru
      _
    // Predicated region
    $region62: #{tpu_custom_call.1} parent=1 // pred_check
      _
    $region63: #{tpu_custom_call.1} parent=1 // pred_check_branch
      %57 = sbr.rel (0) target = $region65
    $region64: #{tpu_custom_call.1} parent=1 // pred_region
      _
    $region65: #{tpu_custom_call.1} parent=1 // pred_fallthru
      _
    // Predicated region
    $region66: #{tpu_custom_call.1} parent=1 // pred_check
      _
    $region67: #{tpu_custom_call.1} parent=1 // pred_check_branch
      %59 = sbr.rel (0) target = $region69
    $region68: #{tpu_custom_call.1} parent=1 // pred_region
      _
    $region69: #{tpu_custom_call.1} parent=1 // pred_fallthru
      _
    %v60 = vld [vmem:[%s1] sm:$0xff]
    %v61 = vld [vmem:[%s1 + $0x8] sm:$0xff]
    %v62 = vld [vmem:[%s1 + $0x10] sm:$0xff]
    %v63 = vld [vmem:[%s1 + $0x18] sm:$0xff]
    %v64 = vld [vmem:[%s1 + $0x20] sm:$0xff]
    %v65 = vld [vmem:[%s1 + $0x28] sm:$0xff]
    %v66 = vld [vmem:[%s1 + $0x30] sm:$0xff]
    %v67 = vld [vmem:[%s1 + $0x38] sm:$0xff]
    %v68 = vld [vmem:[%s1 + $0x40] sm:$0xff]
    %v69 = vld [vmem:[%s1 + $0x48] sm:$0xff]
    %v70 = vld [vmem:[%s1 + $0x50] sm:$0xff]
    %v71 = vld [vmem:[%s1 + $0x58] sm:$0xff]
    %v72 = vld [vmem:[%s1 + $0x60] sm:$0xff]
    %v73 = vld [vmem:[%s1 + $0x68] sm:$0xff]
    %v74 = vld [vmem:[%s1 + $0x70] sm:$0xff]
    %v75 = vld [vmem:[%s1 + $0x78] sm:$0xff]
    %v76 = vld [vmem:[%s2] sm:$0xff]
    %v77 = vld [vmem:[%s2 + $0x8] sm:$0xff]
    %v78 = vld [vmem:[%s3] sm:$0xff]
    %v79 = vld [vmem:[%s3 + $0x8] sm:$0xff]
    %v80 = vld [vmem:[%s3 + $0x10] sm:$0xff]
    %v81 = vld [vmem:[%s3 + $0x18] sm:$0xff]
    %v82 = vld [vmem:[%s3 + $0x20] sm:$0xff]
    %v83 = vld [vmem:[%s3 + $0x28] sm:$0xff]
    %v84 = vld [vmem:[%s3 + $0x30] sm:$0xff]
    %v85 = vld [vmem:[%s3 + $0x38] sm:$0xff]
    %v86 = vld [vmem:[%s3 + $0x40] sm:$0xff]
    %v87 = vld [vmem:[%s3 + $0x48] sm:$0xff]
    %v88 = vld [vmem:[%s3 + $0x50] sm:$0xff]
    %v89 = vld [vmem:[%s3 + $0x58] sm:$0xff]
    %v90 = vld [vmem:[%s3 + $0x60] sm:$0xff]
    %v91 = vld [vmem:[%s3 + $0x68] sm:$0xff]
    %v92 = vld [vmem:[%s3 + $0x70] sm:$0xff]
    %v93 = vld [vmem:[%s3 + $0x78] sm:$0xff]
    %v94 = vld [vmem:[%s4] sm:$0xff]
    %v95 = vld [vmem:[%s0] sm:$0xf]
    %96 = vmatpush.msra.mxu0 %v75
    %97 = vmatpush.msra.mxu0 %v74
    %98 = vmatpush.msra.mxu0 %v73
    %99 = vmatpush.msra.mxu0 %v72
    %100 = vmatpush.msra.mxu0 %v71
    %101 = vmatpush.msra.mxu0 %v70
    %102 = vmatpush.msra.mxu0 %v69
    %103 = vmatpush.msra.mxu0 %v68
    %104 = vmatpush.msra.mxu0 %v67
    %105 = vmatpush.msra.mxu0 %v66
    %106 = vmatpush.msra.mxu0 %v65
    %107 = vmatpush.msra.mxu0 %v64
    %108 = vmatpush.msra.mxu0 %v63
    %109 = vmatpush.msra.mxu0 %v62
    %110 = vmatpush.msra.mxu0 %v61
    %111 = vmatpush.msra.mxu0 %v60
    %112 = vmatmul.f32.gmra.mxu0 %v95
    %v113 = vpop.f32.mrf.mxu0
    %v114 = vadd.f32 0.0, %v113
    %115 = vdwg.mxu0
    %116 = vmatpush.msra.mxu0 %v93
    %117 = vmatpush.msra.mxu0 %v92
    %118 = vmatpush.msra.mxu0 %v91
    %119 = vmatpush.msra.mxu0 %v90
    %120 = vmatpush.msra.mxu0 %v89
    %121 = vmatpush.msra.mxu0 %v88
    %122 = vmatpush.msra.mxu0 %v87
    %123 = vmatpush.msra.mxu0 %v86
    %124 = vmatpush.msra.mxu0 %v85
    %125 = vmatpush.msra.mxu0 %v84
    %126 = vmatpush.msra.mxu0 %v83
    %127 = vmatpush.msra.mxu0 %v82
    %128 = vmatpush.msra.mxu0 %v81
    %129 = vmatpush.msra.mxu0 %v80
    %130 = vmatpush.msra.mxu0 %v79
    %131 = vmatpush.msra.mxu0 %v78
    %132 = vmatmul.f32.gmra.mxu0 %v95
    %v133 = vpop.f32.mrf.mxu0
    %v134 = vadd.f32 0.0, %v133
    %135 = vdwg.mxu0
    %vm136 = vcmask 125952
    %v137 = vsel %vm136, %v114, 0.0
    %138 = vadd.xlane.f32.xlu0 %v137
    %v139 = vpop.xlane.xlu0 %138
    %v140 = vrcp.pop 16.0
    %v141 = vmul.f32 16.0, %v140
    %v142 = vsub.f32 1.0, %v141
    %v143 = vmul.f32 %v140, %v142
    %v144 = vadd.f32 %v140, %v143
    %vm145 = vweird.f32 %v140
    %v146 = vsel %vm145, %v140, %v144
    %v147 = vmul.f32 %v139, %v146
    %v148 = vld [vmem:[%s9] sm:$0xff]
    %v149 = vld [vmem:[%s9 + $0x8] sm:$0xff]
    %v150 = vld [vmem:[%s9 + $0x10] sm:$0xff]
    %v151 = vld [vmem:[%s9 + $0x18] sm:$0xff]
    %v152 = vld [vmem:[%s8] sm:$0xff]
    %v153 = vld [vmem:[%s8 + $0x8] sm:$0xff]
    %v154 = vld [vmem:[%s8 + $0x10] sm:$0xff]
    %v155 = vld [vmem:[%s8 + $0x18] sm:$0xff]
    %v156 = vperm.slane %v147, 0
    %v157 = vmul.f32 %v152, %v156
    %v158 = vmul.f32 %v153, %v156
    %v159 = vmul.f32 %v154, %v156
    %v160 = vmul.f32 %v155, %v156
    %v161 = vperm.slane %v147, 1
    %v162 = vmul.f32 %v152, %v161
    %v163 = vmul.f32 %v153, %v161
    %v164 = vmul.f32 %v154, %v161
    %v165 = vmul.f32 %v155, %v161
    %170 = vrot.lane.b32.xlu0 %v162, 127
    %v171 = vpop.permute.xlu0 %170
    %172 = vrot.lane.b32.xlu0 %v163, 127
    %v173 = vpop.permute.xlu0 %172
    %174 = vrot.lane.b32.xlu0 %v164, 127
    %v175 = vpop.permute.xlu0 %174
    %176 = vrot.lane.b32.xlu0 %v165, 127
    %v177 = vpop.permute.xlu0 %176
    %v182 = vadd.f32 %v157, %v171
    %v183 = vadd.f32 %v158, %v173
    %v184 = vadd.f32 %v159, %v175
    %v185 = vadd.f32 %v160, %v177
    %v186 = vperm.slane %v147, 2
    %v187 = vmul.f32 %v152, %v186
    %v188 = vmul.f32 %v153, %v186
    %v189 = vmul.f32 %v154, %v186
    %v190 = vmul.f32 %v155, %v186
    %195 = vrot.lane.b32.xlu0 %v187, 126
    %v196 = vpop.permute.xlu0 %195
    %197 = vrot.lane.b32.xlu0 %v188, 126
    %v198 = vpop.permute.xlu0 %197
    %199 = vrot.lane.b32.xlu0 %v189, 126
    %v200 = vpop.permute.xlu0 %199
    %201 = vrot.lane.b32.xlu0 %v190, 126
    %v202 = vpop.permute.xlu0 %201
    %v207 = vadd.f32 %v182, %v196
    %v208 = vadd.f32 %v183, %v198
    %v209 = vadd.f32 %v184, %v200
    %v210 = vadd.f32 %v185, %v202
    %v211 = vperm.slane %v147, 3
    %v212 = vmul.f32 %v152, %v211
    %v213 = vmul.f32 %v153, %v211
    %v214 = vmul.f32 %v154, %v211
    %v215 = vmul.f32 %v155, %v211
    %220 = vrot.lane.b32.xlu0 %v212, 125
    %v221 = vpop.permute.xlu0 %220
    %222 = vrot.lane.b32.xlu0 %v213, 125
    %v223 = vpop.permute.xlu0 %222
    %224 = vrot.lane.b32.xlu0 %v214, 125
    %v225 = vpop.permute.xlu0 %224
    %226 = vrot.lane.b32.xlu0 %v215, 125
    %v227 = vpop.permute.xlu0 %226
    %v232 = vadd.f32 %v207, %v221
    %v233 = vadd.f32 %v208, %v223
    %v234 = vadd.f32 %v209, %v225
    %v235 = vadd.f32 %v210, %v227
    %v236 = vadd.f32 %v148, %v232
    %v237 = vadd.f32 %v149, %v233
    %v238 = vadd.f32 %v150, %v234
    %v239 = vadd.f32 %v151, %v235
    %v240 = vld [vmem:[%s5] sm:$0xff]
    %v241 = vld [vmem:[%s5 + $0x8] sm:$0xff]
    %v242 = vld [vmem:[%s5 + $0x10] sm:$0xff]
    %v243 = vld [vmem:[%s5 + $0x18] sm:$0xff]
    %245 = vset.pattern.permute.xlu0 0
    %246 = vperm.xlu0 %245, %v240
    %v247 = vpop.permute.xlu0 %246
    %250 = vset.pattern.permute.xlu0 0
    %251 = vperm.xlu0 %250, %v241
    %v252 = vpop.permute.xlu0 %251
    %255 = vset.pattern.permute.xlu0 0
    %256 = vperm.xlu0 %255, %v242
    %v257 = vpop.permute.xlu0 %256
    %260 = vset.pattern.permute.xlu0 0
    %261 = vperm.xlu0 %260, %v243
    %v262 = vpop.permute.xlu0 %261
    %v264 = vperm.slane %v95, 0
    %v265 = vmul.f32 %v247, %v264
    %v266 = vmul.f32 %v252, %v264
    %v267 = vmul.f32 %v257, %v264
    %v268 = vmul.f32 %v262, %v264
    %269 = vset.pattern.permute.xlu0 1
    %270 = vperm.xlu0 %269, %v240
    %v271 = vpop.permute.xlu0 %270
    %273 = vset.pattern.permute.xlu0 1
    %274 = vperm.xlu0 %273, %v241
    %v275 = vpop.permute.xlu0 %274
    %277 = vset.pattern.permute.xlu0 1
    %278 = vperm.xlu0 %277, %v242
    %v279 = vpop.permute.xlu0 %278
    %281 = vset.pattern.permute.xlu0 1
    %282 = vperm.xlu0 %281, %v243
    %v283 = vpop.permute.xlu0 %282
    %v285 = vperm.slane %v95, 1
    %v286 = vmul.f32 %v271, %v285
    %v287 = vmul.f32 %v275, %v285
    %v288 = vmul.f32 %v279, %v285
    %v289 = vmul.f32 %v283, %v285
    %v290 = vadd.f32 %v265, %v286
    %v291 = vadd.f32 %v266, %v287
    %v292 = vadd.f32 %v267, %v288
    %v293 = vadd.f32 %v268, %v289
    %294 = vset.pattern.permute.xlu0 2
    %295 = vperm.xlu0 %294, %v240
    %v296 = vpop.permute.xlu0 %295
    %298 = vset.pattern.permute.xlu0 2
    %299 = vperm.xlu0 %298, %v241
    %v300 = vpop.permute.xlu0 %299
    %302 = vset.pattern.permute.xlu0 2
    %303 = vperm.xlu0 %302, %v242
    %v304 = vpop.permute.xlu0 %303
    %306 = vset.pattern.permute.xlu0 2
    %307 = vperm.xlu0 %306, %v243
    %v308 = vpop.permute.xlu0 %307
    %v310 = vperm.slane %v95, 2
    %v311 = vmul.f32 %v296, %v310
    %v312 = vmul.f32 %v300, %v310
    %v313 = vmul.f32 %v304, %v310
    %v314 = vmul.f32 %v308, %v310
    %v315 = vadd.f32 %v290, %v311
    %v316 = vadd.f32 %v291, %v312
    %v317 = vadd.f32 %v292, %v313
    %v318 = vadd.f32 %v293, %v314
    %319 = vset.pattern.permute.xlu0 3
    %320 = vperm.xlu0 %319, %v240
    %v321 = vpop.permute.xlu0 %320
    %323 = vset.pattern.permute.xlu0 3
    %324 = vperm.xlu0 %323, %v241
    %v325 = vpop.permute.xlu0 %324
    %327 = vset.pattern.permute.xlu0 3
    %328 = vperm.xlu0 %327, %v242
    %v329 = vpop.permute.xlu0 %328
    %331 = vset.pattern.permute.xlu0 3
    %332 = vperm.xlu0 %331, %v243
    %v333 = vpop.permute.xlu0 %332
    %v335 = vperm.slane %v95, 3
    %v336 = vmul.f32 %v321, %v335
    %v337 = vmul.f32 %v325, %v335
    %v338 = vmul.f32 %v329, %v335
    %v339 = vmul.f32 %v333, %v335
    %v340 = vadd.f32 %v315, %v336
    %v341 = vadd.f32 %v316, %v337
    %v342 = vadd.f32 %v317, %v338
    %v343 = vadd.f32 %v318, %v339
    %v344 = vld [vmem:[%s6] sm:$0xff]
    %v345 = vld [vmem:[%s6 + $0x8] sm:$0xff]
    %v346 = vld [vmem:[%s6 + $0x10] sm:$0xff]
    %v347 = vld [vmem:[%s6 + $0x18] sm:$0xff]
    %349 = vset.pattern.permute.xlu0 0
    %350 = vperm.xlu0 %349, %v344
    %v351 = vpop.permute.xlu0 %350
    %354 = vset.pattern.permute.xlu0 0
    %355 = vperm.xlu0 %354, %v345
    %v356 = vpop.permute.xlu0 %355
    %359 = vset.pattern.permute.xlu0 0
    %360 = vperm.xlu0 %359, %v346
    %v361 = vpop.permute.xlu0 %360
    %364 = vset.pattern.permute.xlu0 0
    %365 = vperm.xlu0 %364, %v347
    %v366 = vpop.permute.xlu0 %365
    %v368 = vperm.slane %v114, 0
    %v369 = vmul.f32 %v351, %v368
    %v370 = vmul.f32 %v356, %v368
    %v371 = vmul.f32 %v361, %v368
    %v372 = vmul.f32 %v366, %v368
    %373 = vset.pattern.permute.xlu0 1
    %374 = vperm.xlu0 %373, %v344
    %v375 = vpop.permute.xlu0 %374
    %377 = vset.pattern.permute.xlu0 1
    %378 = vperm.xlu0 %377, %v345
    %v379 = vpop.permute.xlu0 %378
    %381 = vset.pattern.permute.xlu0 1
    %382 = vperm.xlu0 %381, %v346
    %v383 = vpop.permute.xlu0 %382
    %385 = vset.pattern.permute.xlu0 1
    %386 = vperm.xlu0 %385, %v347
    %v387 = vpop.permute.xlu0 %386
    %v389 = vperm.slane %v114, 1
    %v390 = vmul.f32 %v375, %v389
    %v391 = vmul.f32 %v379, %v389
    %v392 = vmul.f32 %v383, %v389
    %v393 = vmul.f32 %v387, %v389
    %v394 = vadd.f32 %v369, %v390
    %v395 = vadd.f32 %v370, %v391
    %v396 = vadd.f32 %v371, %v392
    %v397 = vadd.f32 %v372, %v393
    %398 = vset.pattern.permute.xlu0 2
    %399 = vperm.xlu0 %398, %v344
    %v400 = vpop.permute.xlu0 %399
    %402 = vset.pattern.permute.xlu0 2
    %403 = vperm.xlu0 %402, %v345
    %v404 = vpop.permute.xlu0 %403
    %406 = vset.pattern.permute.xlu0 2
    %407 = vperm.xlu0 %406, %v346
    %v408 = vpop.permute.xlu0 %407
    %410 = vset.pattern.permute.xlu0 2
    %411 = vperm.xlu0 %410, %v347
    %v412 = vpop.permute.xlu0 %411
    %v414 = vperm.slane %v114, 2
    %v415 = vmul.f32 %v400, %v414
    %v416 = vmul.f32 %v404, %v414
    %v417 = vmul.f32 %v408, %v414
    %v418 = vmul.f32 %v412, %v414
    %v419 = vadd.f32 %v394, %v415
    %v420 = vadd.f32 %v395, %v416
    %v421 = vadd.f32 %v396, %v417
    %v422 = vadd.f32 %v397, %v418
    %423 = vset.pattern.permute.xlu0 3
    %424 = vperm.xlu0 %423, %v344
    %v425 = vpop.permute.xlu0 %424
    %427 = vset.pattern.permute.xlu0 3
    %428 = vperm.xlu0 %427, %v345
    %v429 = vpop.permute.xlu0 %428
    %431 = vset.pattern.permute.xlu0 3
    %432 = vperm.xlu0 %431, %v346
    %v433 = vpop.permute.xlu0 %432
    %435 = vset.pattern.permute.xlu0 3
    %436 = vperm.xlu0 %435, %v347
    %v437 = vpop.permute.xlu0 %436
    %v439 = vperm.slane %v114, 3
    %v440 = vmul.f32 %v425, %v439
    %v441 = vmul.f32 %v429, %v439
    %v442 = vmul.f32 %v433, %v439
    %v443 = vmul.f32 %v437, %v439
    %v444 = vadd.f32 %v419, %v440
    %v445 = vadd.f32 %v420, %v441
    %v446 = vadd.f32 %v421, %v442
    %v447 = vadd.f32 %v422, %v443
    %vm448 = vcmask 130048
    %v450 = vsel %vm448, %v444, 0
    %v453 = vsel %vm448, %v445, 0
    %v456 = vsel %vm448, %v446, 0
    %v459 = vsel %vm448, %v447, 0
    %461 = vmatpush.msra.mxu0 0.0
    %462 = vmatpush.msra.mxu0 0.0
    %463 = vmatpush.msra.mxu0 0.0
    %464 = vmatpush.msra.mxu0 0.0
    %465 = vmatpush.msra.mxu0 0.0
    %466 = vmatpush.msra.mxu0 0.0
    %467 = vmatpush.msra.mxu0 0.0
    %468 = vmatpush.msra.mxu0 0.0
    %469 = vmatpush.msra.mxu0 0.0
    %470 = vmatpush.msra.mxu0 0.0
    %471 = vmatpush.msra.mxu0 0.0
    %472 = vmatpush.msra.mxu0 0.0
    %473 = vmatpush.msra.mxu0 0.0
    %474 = vmatpush.msra.mxu0 0.0
    %475 = vmatpush.msra.mxu0 %v77
    %476 = vmatpush.msra.mxu0 %v76
    %477 = vmatmul.f32.gmra.mxu0 %v450
    %v478 = vpop.f32.mrf.mxu0
    %v479 = vadd.f32 0.0, %v478
    %480 = vmatmul.f32.gmra.mxu0 %v453
    %v481 = vpop.f32.mrf.mxu0
    %v482 = vadd.f32 0.0, %v481
    %483 = vmatmul.f32.gmra.mxu0 %v456
    %v484 = vpop.f32.mrf.mxu0
    %v485 = vadd.f32 0.0, %v484
    %486 = vmatmul.f32.gmra.mxu0 %v459
    %v487 = vpop.f32.mrf.mxu0
    %v488 = vadd.f32 0.0, %v487
    %489 = vdwg.mxu0
    %v490 = vadd.f32 %v340, %v479
    %v491 = vadd.f32 %v341, %v482
    %v492 = vadd.f32 %v342, %v485
    %v493 = vadd.f32 %v343, %v488
    %v494 = vld [vmem:[%s7] sm:$0xff]
    %v495 = vld [vmem:[%s7 + $0x8] sm:$0xff]
    %v496 = vld [vmem:[%s7 + $0x10] sm:$0xff]
    %v497 = vld [vmem:[%s7 + $0x18] sm:$0xff]
    %499 = vset.pattern.permute.xlu0 0
    %500 = vperm.xlu0 %499, %v494
    %v501 = vpop.permute.xlu0 %500
    %504 = vset.pattern.permute.xlu0 0
    %505 = vperm.xlu0 %504, %v495
    %v506 = vpop.permute.xlu0 %505
    %509 = vset.pattern.permute.xlu0 0
    %510 = vperm.xlu0 %509, %v496
    %v511 = vpop.permute.xlu0 %510
    %514 = vset.pattern.permute.xlu0 0
    %515 = vperm.xlu0 %514, %v497
    %v516 = vpop.permute.xlu0 %515
    %v518 = vperm.slane %v134, 0
    %v519 = vmul.f32 %v501, %v518
    %v520 = vmul.f32 %v506, %v518
    %v521 = vmul.f32 %v511, %v518
    %v522 = vmul.f32 %v516, %v518
    %523 = vset.pattern.permute.xlu0 1
    %524 = vperm.xlu0 %523, %v494
    %v525 = vpop.permute.xlu0 %524
    %527 = vset.pattern.permute.xlu0 1
    %528 = vperm.xlu0 %527, %v495
    %v529 = vpop.permute.xlu0 %528
    %531 = vset.pattern.permute.xlu0 1
    %532 = vperm.xlu0 %531, %v496
    %v533 = vpop.permute.xlu0 %532
    %535 = vset.pattern.permute.xlu0 1
    %536 = vperm.xlu0 %535, %v497
    %v537 = vpop.permute.xlu0 %536
    %v539 = vperm.slane %v134, 1
    %v540 = vmul.f32 %v525, %v539
    %v541 = vmul.f32 %v529, %v539
    %v542 = vmul.f32 %v533, %v539
    %v543 = vmul.f32 %v537, %v539
    %v544 = vadd.f32 %v519, %v540
    %v545 = vadd.f32 %v520, %v541
    %v546 = vadd.f32 %v521, %v542
    %v547 = vadd.f32 %v522, %v543
    %548 = vset.pattern.permute.xlu0 2
    %549 = vperm.xlu0 %548, %v494
    %v550 = vpop.permute.xlu0 %549
    %552 = vset.pattern.permute.xlu0 2
    %553 = vperm.xlu0 %552, %v495
    %v554 = vpop.permute.xlu0 %553
    %556 = vset.pattern.permute.xlu0 2
    %557 = vperm.xlu0 %556, %v496
    %v558 = vpop.permute.xlu0 %557
    %560 = vset.pattern.permute.xlu0 2
    %561 = vperm.xlu0 %560, %v497
    %v562 = vpop.permute.xlu0 %561
    %v564 = vperm.slane %v134, 2
    %v565 = vmul.f32 %v550, %v564
    %v566 = vmul.f32 %v554, %v564
    %v567 = vmul.f32 %v558, %v564
    %v568 = vmul.f32 %v562, %v564
    %v569 = vadd.f32 %v544, %v565
    %v570 = vadd.f32 %v545, %v566
    %v571 = vadd.f32 %v546, %v567
    %v572 = vadd.f32 %v547, %v568
    %573 = vset.pattern.permute.xlu0 3
    %574 = vperm.xlu0 %573, %v494
    %v575 = vpop.permute.xlu0 %574
    %577 = vset.pattern.permute.xlu0 3
    %578 = vperm.xlu0 %577, %v495
    %v579 = vpop.permute.xlu0 %578
    %581 = vset.pattern.permute.xlu0 3
    %582 = vperm.xlu0 %581, %v496
    %v583 = vpop.permute.xlu0 %582
    %585 = vset.pattern.permute.xlu0 3
    %586 = vperm.xlu0 %585, %v497
    %v587 = vpop.permute.xlu0 %586
    %v589 = vperm.slane %v134, 3
    %v590 = vmul.f32 %v575, %v589
    %v591 = vmul.f32 %v579, %v589
    %v592 = vmul.f32 %v583, %v589
    %v593 = vmul.f32 %v587, %v589
    %v594 = vadd.f32 %v569, %v590
    %v595 = vadd.f32 %v570, %v591
    %v596 = vadd.f32 %v571, %v592
    %v597 = vadd.f32 %v572, %v593
    %vm598 = vcmask 64512
    %v600 = vsel %vm598, %v594, 0
    %v603 = vsel %vm598, %v595, 0
    %v606 = vsel %vm598, %v596, 0
    %v609 = vsel %vm598, %v597, 0
    %611 = vmatpush.msra.mxu0 0.0
    %612 = vmatpush.msra.mxu0 0.0
    %613 = vmatpush.msra.mxu0 0.0
    %614 = vmatpush.msra.mxu0 0.0
    %615 = vmatpush.msra.mxu0 0.0
    %616 = vmatpush.msra.mxu0 0.0
    %617 = vmatpush.msra.mxu0 0.0
    %618 = vmatpush.msra.mxu0 0.0
    %619 = vmatpush.msra.mxu0 0.0
    %620 = vmatpush.msra.mxu0 0.0
    %621 = vmatpush.msra.mxu0 0.0
    %622 = vmatpush.msra.mxu0 0.0
    %623 = vmatpush.msra.mxu0 0.0
    %624 = vmatpush.msra.mxu0 0.0
    %625 = vmatpush.msra.mxu0 0.0
    %626 = vmatpush.msra.mxu0 %v94
    %627 = vmatmul.f32.gmra.mxu0 %v600
    %v628 = vpop.f32.mrf.mxu0
    %v629 = vadd.f32 0.0, %v628
    %630 = vmatmul.f32.gmra.mxu0 %v603
    %v631 = vpop.f32.mrf.mxu0
    %v632 = vadd.f32 0.0, %v631
    %633 = vmatmul.f32.gmra.mxu0 %v606
    %v634 = vpop.f32.mrf.mxu0
    %v635 = vadd.f32 0.0, %v634
    %636 = vmatmul.f32.gmra.mxu0 %v609
    %v637 = vpop.f32.mrf.mxu0
    %v638 = vadd.f32 0.0, %v637
    %639 = vdwg.mxu0
    %v640 = vadd.f32 %v490, %v629
    %v641 = vadd.f32 %v491, %v632
    %v642 = vadd.f32 %v492, %v635
    %v643 = vadd.f32 %v493, %v638
    %645 = vset.pattern.permute.xlu0 0
    %646 = vperm.xlu0 %645, %v236
    %v647 = vpop.permute.xlu0 %646
    %650 = vset.pattern.permute.xlu0 0
    %651 = vperm.xlu0 %650, %v237
    %v652 = vpop.permute.xlu0 %651
    %655 = vset.pattern.permute.xlu0 0
    %656 = vperm.xlu0 %655, %v238
    %v657 = vpop.permute.xlu0 %656
    %660 = vset.pattern.permute.xlu0 0
    %661 = vperm.xlu0 %660, %v239
    %v662 = vpop.permute.xlu0 %661
    %v664 = vadd.f32 %v640, %v647
    %v665 = vadd.f32 %v641, %v652
    %v666 = vadd.f32 %v642, %v657
    %v667 = vadd.f32 %v643, %v662
    %v668 = vmax.f32 %v664, 0.0
    %v669 = vmax.f32 %v665, 0.0
    %v670 = vmax.f32 %v666, 0.0
    %v671 = vmax.f32 %v667, 0.0
    %672 = vmatpush.msra.mxu0 %v75
    %673 = vmatpush.msra.mxu0 %v74
    %674 = vmatpush.msra.mxu0 %v73
    %675 = vmatpush.msra.mxu0 %v72
    %676 = vmatpush.msra.mxu0 %v71
    %677 = vmatpush.msra.mxu0 %v70
    %678 = vmatpush.msra.mxu0 %v69
    %679 = vmatpush.msra.mxu0 %v68
    %680 = vmatpush.msra.mxu0 %v67
    %681 = vmatpush.msra.mxu0 %v66
    %682 = vmatpush.msra.mxu0 %v65
    %683 = vmatpush.msra.mxu0 %v64
    %684 = vmatpush.msra.mxu0 %v63
    %685 = vmatpush.msra.mxu0 %v62
    %686 = vmatpush.msra.mxu0 %v61
    %687 = vmatpush.msra.mxu0 %v60
    %688 = vmatmul.f32.gmra.mxu0 %v668
    %v689 = vpop.f32.mrf.mxu0
    %v690 = vadd.f32 0.0, %v689
    %691 = vmatmul.f32.gmra.mxu0 %v669
    %v692 = vpop.f32.mrf.mxu0
    %v693 = vadd.f32 0.0, %v692
    %694 = vmatmul.f32.gmra.mxu0 %v670
    %v695 = vpop.f32.mrf.mxu0
    %v696 = vadd.f32 0.0, %v695
    %697 = vmatmul.f32.gmra.mxu0 %v671
    %v698 = vpop.f32.mrf.mxu0
    %v699 = vadd.f32 0.0, %v698
    %700 = vdwg.mxu0
    %701 = vmatpush.msra.mxu0 %v93
    %702 = vmatpush.msra.mxu0 %v92
    %703 = vmatpush.msra.mxu0 %v91
    %704 = vmatpush.msra.mxu0 %v90
    %705 = vmatpush.msra.mxu0 %v89
    %706 = vmatpush.msra.mxu0 %v88
    %707 = vmatpush.msra.mxu0 %v87
    %708 = vmatpush.msra.mxu0 %v86
    %709 = vmatpush.msra.mxu0 %v85
    %710 = vmatpush.msra.mxu0 %v84
    %711 = vmatpush.msra.mxu0 %v83
    %712 = vmatpush.msra.mxu0 %v82
    %713 = vmatpush.msra.mxu0 %v81
    %714 = vmatpush.msra.mxu0 %v80
    %715 = vmatpush.msra.mxu0 %v79
    %716 = vmatpush.msra.mxu0 %v78
    %717 = vmatmul.f32.gmra.mxu0 %v668
    %v718 = vpop.f32.mrf.mxu0
    %v719 = vadd.f32 0.0, %v718
    %720 = vmatmul.f32.gmra.mxu0 %v669
    %v721 = vpop.f32.mrf.mxu0
    %v722 = vadd.f32 0.0, %v721
    %723 = vmatmul.f32.gmra.mxu0 %v670
    %v724 = vpop.f32.mrf.mxu0
    %v725 = vadd.f32 0.0, %v724
    %726 = vmatmul.f32.gmra.mxu0 %v671
    %v727 = vpop.f32.mrf.mxu0
    %v728 = vadd.f32 0.0, %v727
    %729 = vdwg.mxu0
    %v730 = vsel %vm448, %v690, 0.0
    %731 = vadd.xlane.f32.xlu0 %v730
    %v732 = vpop.xlane.xlu0 %731
    %v733 = vsel %vm448, %v693, 0.0
    %734 = vadd.xlane.f32.xlu0 %v733
    %v735 = vpop.xlane.xlu0 %734
    %v736 = vsel %vm448, %v696, 0.0
    %737 = vadd.xlane.f32.xlu0 %v736
    %v738 = vpop.xlane.xlu0 %737
    %v739 = vsel %vm448, %v699, 0.0
    %740 = vadd.xlane.f32.xlu0 %v739
    %v741 = vpop.xlane.xlu0 %740
    %v742 = vmul.f32 %v732, %v146
    %v743 = vmul.f32 %v735, %v146
    %v744 = vmul.f32 %v738, %v146
    %v745 = vmul.f32 %v741, %v146
    %v746 = vld [vmem:[%s14] sm:$0xff]
    %v747 = vld [vmem:[%s14 + $0x8] sm:$0xff]
    %v748 = vld [vmem:[%s14 + $0x10] sm:$0xff]
    %v749 = vld [vmem:[%s14 + $0x18] sm:$0xff]
    %v750 = vld [vmem:[%s13] sm:$0xff]
    %v751 = vld [vmem:[%s13 + $0x8] sm:$0xff]
    %v752 = vld [vmem:[%s13 + $0x10] sm:$0xff]
    %v753 = vld [vmem:[%s13 + $0x18] sm:$0xff]
    %vm754 = vcmask 261120
    %v756 = vsel %vm754, %v750, 0
    %v759 = vsel %vm754, %v751, 0
    %v762 = vsel %vm754, %v752, 0
    %v765 = vsel %vm754, %v753, 0
    %767 = vmatpush.msra.mxu0 0.0
    %768 = vmatpush.msra.mxu0 0.0
    %769 = vmatpush.msra.mxu0 0.0
    %770 = vmatpush.msra.mxu0 0.0
    %771 = vmatpush.msra.mxu0 0.0
    %772 = vmatpush.msra.mxu0 0.0
    %773 = vmatpush.msra.mxu0 0.0
    %774 = vmatpush.msra.mxu0 0.0
    %775 = vmatpush.msra.mxu0 0.0
    %776 = vmatpush.msra.mxu0 0.0
    %777 = vmatpush.msra.mxu0 0.0
    %778 = vmatpush.msra.mxu0 0.0
    %779 = vmatpush.msra.mxu0 %v745
    %780 = vmatpush.msra.mxu0 %v744
    %781 = vmatpush.msra.mxu0 %v743
    %782 = vmatpush.msra.mxu0 %v742
    %783 = vmatmul.f32.gmra.mxu0 %v756
    %v784 = vpop.f32.mrf.mxu0
    %v785 = vadd.f32 0.0, %v784
    %786 = vmatmul.f32.gmra.mxu0 %v759
    %v787 = vpop.f32.mrf.mxu0
    %v788 = vadd.f32 0.0, %v787
    %789 = vmatmul.f32.gmra.mxu0 %v762
    %v790 = vpop.f32.mrf.mxu0
    %v791 = vadd.f32 0.0, %v790
    %792 = vmatmul.f32.gmra.mxu0 %v765
    %v793 = vpop.f32.mrf.mxu0
    %v794 = vadd.f32 0.0, %v793
    %795 = vdwg.mxu0
    %v796 = vadd.f32 %v746, %v785
    %v797 = vadd.f32 %v747, %v788
    %v798 = vadd.f32 %v748, %v791
    %v799 = vadd.f32 %v749, %v794
    %v800 = vld [vmem:[%s10] sm:$0xff]
    %v801 = vld [vmem:[%s10 + $0x8] sm:$0xff]
    %v802 = vld [vmem:[%s10 + $0x10] sm:$0xff]
    %v803 = vld [vmem:[%s10 + $0x18] sm:$0xff]
    %v804 = vld [vmem:[%s11] sm:$0xff]
    %v805 = vld [vmem:[%s11 + $0x8] sm:$0xff]
    %v806 = vld [vmem:[%s11 + $0x10] sm:$0xff]
    %v807 = vld [vmem:[%s11 + $0x18] sm:$0xff]
    %v809 = vsel %vm754, %v804, 0
    %v812 = vsel %vm754, %v805, 0
    %v815 = vsel %vm754, %v806, 0
    %v818 = vsel %vm754, %v807, 0
    %820 = vmatpush.msra.mxu0 0.0
    %821 = vmatpush.msra.mxu0 0.0
    %822 = vmatpush.msra.mxu0 0.0
    %823 = vmatpush.msra.mxu0 0.0
    %824 = vmatpush.msra.mxu0 0.0
    %825 = vmatpush.msra.mxu0 0.0
    %826 = vmatpush.msra.mxu0 0.0
    %827 = vmatpush.msra.mxu0 0.0
    %828 = vmatpush.msra.mxu0 0.0
    %829 = vmatpush.msra.mxu0 0.0
    %830 = vmatpush.msra.mxu0 0.0
    %831 = vmatpush.msra.mxu0 0.0
    %832 = vmatpush.msra.mxu0 %v699
    %833 = vmatpush.msra.mxu0 %v696
    %834 = vmatpush.msra.mxu0 %v693
    %835 = vmatpush.msra.mxu0 %v690
    %836 = vmatmul.f32.gmra.mxu0 %v809
    %v837 = vpop.f32.mrf.mxu0
    %v838 = vadd.f32 0.0, %v837
    %839 = vmatmul.f32.gmra.mxu0 %v812
    %v840 = vpop.f32.mrf.mxu0
    %v841 = vadd.f32 0.0, %v840
    %842 = vmatmul.f32.gmra.mxu0 %v815
    %v843 = vpop.f32.mrf.mxu0
    %v844 = vadd.f32 0.0, %v843
    %845 = vmatmul.f32.gmra.mxu0 %v818
    %v846 = vpop.f32.mrf.mxu0
    %v847 = vadd.f32 0.0, %v846
    %848 = vdwg.mxu0
    %v850 = vsel %vm448, %v838, 0
    %v853 = vsel %vm448, %v841, 0
    %v856 = vsel %vm448, %v844, 0
    %v859 = vsel %vm448, %v847, 0
    %861 = vmatpush.msra.mxu0 0.0
    %862 = vmatpush.msra.mxu0 0.0
    %863 = vmatpush.msra.mxu0 0.0
    %864 = vmatpush.msra.mxu0 0.0
    %865 = vmatpush.msra.mxu0 0.0
    %866 = vmatpush.msra.mxu0 0.0
    %867 = vmatpush.msra.mxu0 0.0
    %868 = vmatpush.msra.mxu0 0.0
    %869 = vmatpush.msra.mxu0 0.0
    %870 = vmatpush.msra.mxu0 0.0
    %871 = vmatpush.msra.mxu0 0.0
    %872 = vmatpush.msra.mxu0 0.0
    %873 = vmatpush.msra.mxu0 0.0
    %874 = vmatpush.msra.mxu0 0.0
    %875 = vmatpush.msra.mxu0 %v77
    %876 = vmatpush.msra.mxu0 %v76
    %877 = vmatmul.f32.gmra.mxu0 %v850
    %v878 = vpop.f32.mrf.mxu0
    %v879 = vadd.f32 0.0, %v878
    %880 = vmatmul.f32.gmra.mxu0 %v853
    %v881 = vpop.f32.mrf.mxu0
    %v882 = vadd.f32 0.0, %v881
    %883 = vmatmul.f32.gmra.mxu0 %v856
    %v884 = vpop.f32.mrf.mxu0
    %v885 = vadd.f32 0.0, %v884
    %886 = vmatmul.f32.gmra.mxu0 %v859
    %v887 = vpop.f32.mrf.mxu0
    %v888 = vadd.f32 0.0, %v887
    %889 = vdwg.mxu0
    %v891 = vsel %vm754, %v800, 0
    %v894 = vsel %vm754, %v801, 0
    %v897 = vsel %vm754, %v802, 0
    %v900 = vsel %vm754, %v803, 0
    %902 = vmatpush.msra.mxu0 0.0
    %903 = vmatpush.msra.mxu0 0.0
    %904 = vmatpush.msra.mxu0 0.0
    %905 = vmatpush.msra.mxu0 0.0
    %906 = vmatpush.msra.mxu0 0.0
    %907 = vmatpush.msra.mxu0 0.0
    %908 = vmatpush.msra.mxu0 0.0
    %909 = vmatpush.msra.mxu0 0.0
    %910 = vmatpush.msra.mxu0 0.0
    %911 = vmatpush.msra.mxu0 0.0
    %912 = vmatpush.msra.mxu0 0.0
    %913 = vmatpush.msra.mxu0 0.0
    %914 = vmatpush.msra.mxu0 %v671
    %915 = vmatpush.msra.mxu0 %v670
    %916 = vmatpush.msra.mxu0 %v669
    %917 = vmatpush.msra.mxu0 %v668
    %918 = vmatmul.f32.gmra.mxu0 %v891
    %v919 = vpop.f32.mrf.mxu0
    %v920 = vadd.f32 %v879, %v919
    %921 = vmatmul.f32.gmra.mxu0 %v894
    %v922 = vpop.f32.mrf.mxu0
    %v923 = vadd.f32 %v882, %v922
    %924 = vmatmul.f32.gmra.mxu0 %v897
    %v925 = vpop.f32.mrf.mxu0
    %v926 = vadd.f32 %v885, %v925
    %927 = vmatmul.f32.gmra.mxu0 %v900
    %v928 = vpop.f32.mrf.mxu0
    %v929 = vadd.f32 %v888, %v928
    %930 = vdwg.mxu0
    %v931 = vld [vmem:[%s12] sm:$0xff]
    %v932 = vld [vmem:[%s12 + $0x8] sm:$0xff]
    %v933 = vld [vmem:[%s12 + $0x10] sm:$0xff]
    %v934 = vld [vmem:[%s12 + $0x18] sm:$0xff]
    %v936 = vsel %vm754, %v931, 0
    %v939 = vsel %vm754, %v932, 0
    %v942 = vsel %vm754, %v933, 0
    %v945 = vsel %vm754, %v934, 0
    %947 = vmatpush.msra.mxu0 0.0
    %948 = vmatpush.msra.mxu0 0.0
    %949 = vmatpush.msra.mxu0 0.0
    %950 = vmatpush.msra.mxu0 0.0
    %951 = vmatpush.msra.mxu0 0.0
    %952 = vmatpush.msra.mxu0 0.0
    %953 = vmatpush.msra.mxu0 0.0
    %954 = vmatpush.msra.mxu0 0.0
    %955 = vmatpush.msra.mxu0 0.0
    %956 = vmatpush.msra.mxu0 0.0
    %957 = vmatpush.msra.mxu0 0.0
    %958 = vmatpush.msra.mxu0 0.0
    %959 = vmatpush.msra.mxu0 %v728
    %960 = vmatpush.msra.mxu0 %v725
    %961 = vmatpush.msra.mxu0 %v722
    %962 = vmatpush.msra.mxu0 %v719
    %963 = vmatmul.f32.gmra.mxu0 %v936
    %v964 = vpop.f32.mrf.mxu0
    %v965 = vadd.f32 0.0, %v964
    %966 = vmatmul.f32.gmra.mxu0 %v939
    %v967 = vpop.f32.mrf.mxu0
    %v968 = vadd.f32 0.0, %v967
    %969 = vmatmul.f32.gmra.mxu0 %v942
    %v970 = vpop.f32.mrf.mxu0
    %v971 = vadd.f32 0.0, %v970
    %972 = vmatmul.f32.gmra.mxu0 %v945
    %v973 = vpop.f32.mrf.mxu0
    %v974 = vadd.f32 0.0, %v973
    %975 = vdwg.mxu0
    %v977 = vsel %vm598, %v965, 0
    %v980 = vsel %vm598, %v968, 0
    %v983 = vsel %vm598, %v971, 0
    %v986 = vsel %vm598, %v974, 0
    %988 = vmatpush.msra.mxu0 0.0
    %989 = vmatpush.msra.mxu0 0.0
    %990 = vmatpush.msra.mxu0 0.0
    %991 = vmatpush.msra.mxu0 0.0
    %992 = vmatpush.msra.mxu0 0.0
    %993 = vmatpush.msra.mxu0 0.0
    %994 = vmatpush.msra.mxu0 0.0
    %995 = vmatpush.msra.mxu0 0.0
    %996 = vmatpush.msra.mxu0 0.0
    %997 = vmatpush.msra.mxu0 0.0
    %998 = vmatpush.msra.mxu0 0.0
    %999 = vmatpush.msra.mxu0 0.0
    %1000 = vmatpush.msra.mxu0 0.0
    %1001 = vmatpush.msra.mxu0 0.0
    %1002 = vmatpush.msra.mxu0 0.0
    %1003 = vmatpush.msra.mxu0 %v94
    %1004 = vmatmul.f32.gmra.mxu0 %v977
    %v1005 = vpop.f32.mrf.mxu0
    %v1006 = vadd.f32 0.0, %v1005
    %1007 = vmatmul.f32.gmra.mxu0 %v980
    %v1008 = vpop.f32.mrf.mxu0
    %v1009 = vadd.f32 0.0, %v1008
    %1010 = vmatmul.f32.gmra.mxu0 %v983
    %v1011 = vpop.f32.mrf.mxu0
    %v1012 = vadd.f32 0.0, %v1011
    %1013 = vmatmul.f32.gmra.mxu0 %v986
    %v1014 = vpop.f32.mrf.mxu0
    %v1015 = vadd.f32 0.0, %v1014
    %1016 = vdwg.mxu0
    %v1017 = vadd.f32 %v920, %v1006
    %v1018 = vadd.f32 %v923, %v1009
    %v1019 = vadd.f32 %v926, %v1012
    %v1020 = vadd.f32 %v929, %v1015
    %1022 = vset.pattern.permute.xlu0 0
    %1023 = vperm.xlu0 %1022, %v796
    %v1024 = vpop.permute.xlu0 %1023
    %1027 = vset.pattern.permute.xlu0 0
    %1028 = vperm.xlu0 %1027, %v797
    %v1029 = vpop.permute.xlu0 %1028
    %1032 = vset.pattern.permute.xlu0 0
    %1033 = vperm.xlu0 %1032, %v798
    %v1034 = vpop.permute.xlu0 %1033
    %1037 = vset.pattern.permute.xlu0 0
    %1038 = vperm.xlu0 %1037, %v799
    %v1039 = vpop.permute.xlu0 %1038
    %v1041 = vadd.f32 %v1017, %v1024
    %v1042 = vadd.f32 %v1018, %v1029
    %v1043 = vadd.f32 %v1019, %v1034
    %v1044 = vadd.f32 %v1020, %v1039
    %v1045 = vmax.f32 %v1041, 0.0
    %v1046 = vmax.f32 %v1042, 0.0
    %v1047 = vmax.f32 %v1043, 0.0
    %v1048 = vmax.f32 %v1044, 0.0
    %v1049 = vld [vmem:[%s15] sm:$0xff]
    %v1050 = vld [vmem:[%s15 + $0x8] sm:$0xff]
    %v1051 = vld [vmem:[%s16] sm:$0xff]
    %v1052 = vld [vmem:[%s16 + $0x8] sm:$0xff]
    %1054 = vset.pattern.permute.xlu0 0
    %1055 = vperm.xlu0 %1054, %v1051
    %v1056 = vpop.permute.xlu0 %1055
    %1059 = vset.pattern.permute.xlu0 0
    %1060 = vperm.xlu0 %1059, %v1052
    %v1061 = vpop.permute.xlu0 %1060
    %v1064 = vsel %vm754, %v1049, 0
    %v1067 = vsel %vm754, %v1050, 0
    %1069 = vmatpush.msra.mxu0 0.0
    %1070 = vmatpush.msra.mxu0 0.0
    %1071 = vmatpush.msra.mxu0 0.0
    %1072 = vmatpush.msra.mxu0 0.0
    %1073 = vmatpush.msra.mxu0 0.0
    %1074 = vmatpush.msra.mxu0 0.0
    %1075 = vmatpush.msra.mxu0 0.0
    %1076 = vmatpush.msra.mxu0 0.0
    %1077 = vmatpush.msra.mxu0 0.0
    %1078 = vmatpush.msra.mxu0 0.0
    %1079 = vmatpush.msra.mxu0 0.0
    %1080 = vmatpush.msra.mxu0 0.0
    %1081 = vmatpush.msra.mxu0 %v1048
    %1082 = vmatpush.msra.mxu0 %v1047
    %1083 = vmatpush.msra.mxu0 %v1046
    %1084 = vmatpush.msra.mxu0 %v1045
    %1085 = vmatmul.f32.gmra.mxu0 %v1064
    %v1086 = vpop.f32.mrf.mxu0
    %v1087 = vadd.f32 %v1056, %v1086
    %1088 = vmatmul.f32.gmra.mxu0 %v1067
    %v1089 = vpop.f32.mrf.mxu0
    %v1090 = vadd.f32 %v1061, %v1089
    %1091 = vdwg.mxu0
    %1094 = vrot.lane.b32.xlu0 %v1087, 112
    %v1095 = vpop.permute.xlu0 %1094
    %1096 = vrot.lane.b32.xlu0 %v1090, 112
    %v1097 = vpop.permute.xlu0 %1096
    %1100 = vrot.lane.b32.xlu0 %v1087, 96
    %v1101 = vpop.permute.xlu0 %1100
    %1102 = vrot.lane.b32.xlu0 %v1090, 96
    %v1103 = vpop.permute.xlu0 %1102
    %1106 = vrot.lane.b32.xlu0 %v1087, 80
    %v1107 = vpop.permute.xlu0 %1106
    %1108 = vrot.lane.b32.xlu0 %v1090, 80
    %v1109 = vpop.permute.xlu0 %1108
    %1112 = vrot.lane.b32.xlu0 %v1087, 64
    %v1113 = vpop.permute.xlu0 %1112
    %1114 = vrot.lane.b32.xlu0 %v1090, 64
    %v1115 = vpop.permute.xlu0 %1114
    %1118 = vrot.lane.b32.xlu0 %v1087, 48
    %v1119 = vpop.permute.xlu0 %1118
    %1120 = vrot.lane.b32.xlu0 %v1090, 48
    %v1121 = vpop.permute.xlu0 %1120
    %1124 = vrot.lane.b32.xlu0 %v1087, 32
    %v1125 = vpop.permute.xlu0 %1124
    %1126 = vrot.lane.b32.xlu0 %v1090, 32
    %v1127 = vpop.permute.xlu0 %1126
    %1130 = vrot.lane.b32.xlu0 %v1087, 16
    %v1131 = vpop.permute.xlu0 %1130
    %1132 = vrot.lane.b32.xlu0 %v1090, 16
    %v1133 = vpop.permute.xlu0 %1132
    %v1136 = vrot.slane %v1101, 4
    %vm1137 = vcmask 1047556
    %v1138 = vsel %vm1137, %v1136, %v1087
    %v1139 = vrot.slane %v1087, 4
    %v1140 = vsel %vm1137, %v1101, %v1139
    %v1142 = vunpack.c.l.s4 1983009808
    %v1143 = vunpack.c.0.s8 %v1142
    %v1144 = vperm.slane %v1138, %v1143
    %v1146 = vunpack.c.l.s4 1983009808
    %v1147 = vunpack.c.0.s8 %v1146
    %v1148 = vperm.slane %v1140, %v1147
    %v1149 = vrot.slane %v1107, 4
    %v1150 = vsel %vm1137, %v1149, %v1095
    %v1151 = vrot.slane %v1095, 4
    %v1152 = vsel %vm1137, %v1107, %v1151
    %v1154 = vunpack.c.l.s4 1983009808
    %v1155 = vunpack.c.0.s8 %v1154
    %v1156 = vperm.slane %v1150, %v1155
    %v1158 = vunpack.c.l.s4 1983009808
    %v1159 = vunpack.c.0.s8 %v1158
    %v1160 = vperm.slane %v1152, %v1159
    %v1161 = vrot.slane %v1125, 4
    %v1162 = vsel %vm1137, %v1161, %v1113
    %v1163 = vrot.slane %v1113, 4
    %v1164 = vsel %vm1137, %v1125, %v1163
    %v1166 = vunpack.c.l.s4 1983009808
    %v1167 = vunpack.c.0.s8 %v1166
    %v1168 = vperm.slane %v1162, %v1167
    %v1170 = vunpack.c.l.s4 1983009808
    %v1171 = vunpack.c.0.s8 %v1170
    %v1172 = vperm.slane %v1164, %v1171
    %v1173 = vrot.slane %v1131, 4
    %v1174 = vsel %vm1137, %v1173, %v1119
    %v1175 = vrot.slane %v1119, 4
    %v1176 = vsel %vm1137, %v1131, %v1175
    %v1178 = vunpack.c.l.s4 1983009808
    %v1179 = vunpack.c.0.s8 %v1178
    %v1180 = vperm.slane %v1174, %v1179
    %v1182 = vunpack.c.l.s4 1983009808
    %v1183 = vunpack.c.0.s8 %v1182
    %v1184 = vperm.slane %v1176, %v1183
    %v1185 = vrot.slane %v1156, 4
    %v1186 = vsel %vm1137, %v1185, %v1144
    %v1187 = vrot.slane %v1144, 4
    %v1188 = vsel %vm1137, %v1156, %v1187
    %v1190 = vunpack.c.l.s4 1934713408
    %v1191 = vunpack.c.0.s8 %v1190
    %v1192 = vperm.slane %v1186, %v1191
    %v1194 = vunpack.c.l.s4 1934713408
    %v1195 = vunpack.c.0.s8 %v1194
    %v1196 = vperm.slane %v1188, %v1195
    %v1197 = vrot.slane %v1160, 4
    %v1198 = vsel %vm1137, %v1197, %v1148
    %v1199 = vrot.slane %v1148, 4
    %v1200 = vsel %vm1137, %v1160, %v1199
    %v1202 = vunpack.c.l.s4 1934713408
    %v1203 = vunpack.c.0.s8 %v1202
    %v1204 = vperm.slane %v1198, %v1203
    %v1206 = vunpack.c.l.s4 1934713408
    %v1207 = vunpack.c.0.s8 %v1206
    %v1208 = vperm.slane %v1200, %v1207
    %v1209 = vrot.slane %v1180, 4
    %v1210 = vsel %vm1137, %v1209, %v1168
    %v1211 = vrot.slane %v1168, 4
    %v1212 = vsel %vm1137, %v1180, %v1211
    %v1214 = vunpack.c.l.s4 1934713408
    %v1215 = vunpack.c.0.s8 %v1214
    %v1216 = vperm.slane %v1210, %v1215
    %v1218 = vunpack.c.l.s4 1934713408
    %v1219 = vunpack.c.0.s8 %v1218
    %v1220 = vperm.slane %v1212, %v1219
    %v1221 = vrot.slane %v1184, 4
    %v1222 = vsel %vm1137, %v1221, %v1172
    %v1223 = vrot.slane %v1172, 4
    %v1224 = vsel %vm1137, %v1184, %v1223
    %v1226 = vunpack.c.l.s4 1934713408
    %v1227 = vunpack.c.0.s8 %v1226
    %v1228 = vperm.slane %v1222, %v1227
    %v1230 = vunpack.c.l.s4 1934713408
    %v1231 = vunpack.c.0.s8 %v1230
    %v1232 = vperm.slane %v1224, %v1231
    %v1233 = vrot.slane %v1216, 4
    %v1234 = vsel %vm1137, %v1233, %v1192
    %v1235 = vrot.slane %v1192, 4
    %v1236 = vsel %vm1137, %v1216, %v1235
    %v1237 = vrot.slane %v1220, 4
    %v1238 = vsel %vm1137, %v1237, %v1196
    %v1239 = vrot.slane %v1196, 4
    %v1240 = vsel %vm1137, %v1220, %v1239
    %v1241 = vrot.slane %v1228, 4
    %v1242 = vsel %vm1137, %v1241, %v1204
    %v1243 = vrot.slane %v1204, 4
    %v1244 = vsel %vm1137, %v1228, %v1243
    %v1245 = vrot.slane %v1232, 4
    %v1246 = vsel %vm1137, %v1245, %v1208
    %v1247 = vrot.slane %v1208, 4
    %v1248 = vsel %vm1137, %v1232, %v1247
    %v1249 = vrot.slane %v1103, 4
    %v1250 = vsel %vm1137, %v1249, %v1090
    %v1251 = vrot.slane %v1090, 4
    %v1252 = vsel %vm1137, %v1103, %v1251
    %v1254 = vunpack.c.l.s4 1983009808
    %v1255 = vunpack.c.0.s8 %v1254
    %v1256 = vperm.slane %v1250, %v1255
    %v1258 = vunpack.c.l.s4 1983009808
    %v1259 = vunpack.c.0.s8 %v1258
    %v1260 = vperm.slane %v1252, %v1259
    %v1261 = vrot.slane %v1109, 4
    %v1262 = vsel %vm1137, %v1261, %v1097
    %v1263 = vrot.slane %v1097, 4
    %v1264 = vsel %vm1137, %v1109, %v1263
    %v1266 = vunpack.c.l.s4 1983009808
    %v1267 = vunpack.c.0.s8 %v1266
    %v1268 = vperm.slane %v1262, %v1267
    %v1270 = vunpack.c.l.s4 1983009808
    %v1271 = vunpack.c.0.s8 %v1270
    %v1272 = vperm.slane %v1264, %v1271
    %v1273 = vrot.slane %v1127, 4
    %v1274 = vsel %vm1137, %v1273, %v1115
    %v1275 = vrot.slane %v1115, 4
    %v1276 = vsel %vm1137, %v1127, %v1275
    %v1278 = vunpack.c.l.s4 1983009808
    %v1279 = vunpack.c.0.s8 %v1278
    %v1280 = vperm.slane %v1274, %v1279
    %v1282 = vunpack.c.l.s4 1983009808
    %v1283 = vunpack.c.0.s8 %v1282
    %v1284 = vperm.slane %v1276, %v1283
    %v1285 = vrot.slane %v1133, 4
    %v1286 = vsel %vm1137, %v1285, %v1121
    %v1287 = vrot.slane %v1121, 4
    %v1288 = vsel %vm1137, %v1133, %v1287
    %v1290 = vunpack.c.l.s4 1983009808
    %v1291 = vunpack.c.0.s8 %v1290
    %v1292 = vperm.slane %v1286, %v1291
    %v1294 = vunpack.c.l.s4 1983009808
    %v1295 = vunpack.c.0.s8 %v1294
    %v1296 = vperm.slane %v1288, %v1295
    %v1297 = vrot.slane %v1268, 4
    %v1298 = vsel %vm1137, %v1297, %v1256
    %v1299 = vrot.slane %v1256, 4
    %v1300 = vsel %vm1137, %v1268, %v1299
    %v1302 = vunpack.c.l.s4 1934713408
    %v1303 = vunpack.c.0.s8 %v1302
    %v1304 = vperm.slane %v1298, %v1303
    %v1306 = vunpack.c.l.s4 1934713408
    %v1307 = vunpack.c.0.s8 %v1306
    %v1308 = vperm.slane %v1300, %v1307
    %v1309 = vrot.slane %v1272, 4
    %v1310 = vsel %vm1137, %v1309, %v1260
    %v1311 = vrot.slane %v1260, 4
    %v1312 = vsel %vm1137, %v1272, %v1311
    %v1314 = vunpack.c.l.s4 1934713408
    %v1315 = vunpack.c.0.s8 %v1314
    %v1316 = vperm.slane %v1310, %v1315
    %v1318 = vunpack.c.l.s4 1934713408
    %v1319 = vunpack.c.0.s8 %v1318
    %v1320 = vperm.slane %v1312, %v1319
    %v1321 = vrot.slane %v1292, 4
    %v1322 = vsel %vm1137, %v1321, %v1280
    %v1323 = vrot.slane %v1280, 4
    %v1324 = vsel %vm1137, %v1292, %v1323
    %v1326 = vunpack.c.l.s4 1934713408
    %v1327 = vunpack.c.0.s8 %v1326
    %v1328 = vperm.slane %v1322, %v1327
    %v1330 = vunpack.c.l.s4 1934713408
    %v1331 = vunpack.c.0.s8 %v1330
    %v1332 = vperm.slane %v1324, %v1331
    %v1333 = vrot.slane %v1296, 4
    %v1334 = vsel %vm1137, %v1333, %v1284
    %v1335 = vrot.slane %v1284, 4
    %v1336 = vsel %vm1137, %v1296, %v1335
    %v1338 = vunpack.c.l.s4 1934713408
    %v1339 = vunpack.c.0.s8 %v1338
    %v1340 = vperm.slane %v1334, %v1339
    %v1342 = vunpack.c.l.s4 1934713408
    %v1343 = vunpack.c.0.s8 %v1342
    %v1344 = vperm.slane %v1336, %v1343
    %v1345 = vrot.slane %v1328, 4
    %v1346 = vsel %vm1137, %v1345, %v1304
    %v1347 = vrot.slane %v1304, 4
    %v1348 = vsel %vm1137, %v1328, %v1347
    %v1349 = vrot.slane %v1332, 4
    %v1350 = vsel %vm1137, %v1349, %v1308
    %v1351 = vrot.slane %v1308, 4
    %v1352 = vsel %vm1137, %v1332, %v1351
    %v1353 = vrot.slane %v1340, 4
    %v1354 = vsel %vm1137, %v1353, %v1316
    %v1355 = vrot.slane %v1316, 4
    %v1356 = vsel %vm1137, %v1340, %v1355
    %v1357 = vrot.slane %v1344, 4
    %v1358 = vsel %vm1137, %v1357, %v1320
    %v1359 = vrot.slane %v1320, 4
    %v1360 = vsel %vm1137, %v1344, %v1359
    %v1361 = vsel %vm448, %v1234, -inf
    %v1362 = vrot.slane %v1361, 4
    %v1363 = vmax.f32 %v1361, %v1362
    %v1364 = vrot.slane %v1363, 2
    %v1365 = vmax.f32 %v1363, %v1364
    %v1366 = vrot.slane %v1365, 1
    %v1367 = vmax.f32 %v1365, %v1366
    %v1368 = vsel %vm448, %v1236, -inf
    %v1369 = vrot.slane %v1368, 4
    %v1370 = vmax.f32 %v1368, %v1369
    %v1371 = vrot.slane %v1370, 2
    %v1372 = vmax.f32 %v1370, %v1371
    %v1373 = vrot.slane %v1372, 1
    %v1374 = vmax.f32 %v1372, %v1373
    %v1375 = vsel %vm448, %v1238, -inf
    %v1376 = vrot.slane %v1375, 4
    %v1377 = vmax.f32 %v1375, %v1376
    %v1378 = vrot.slane %v1377, 2
    %v1379 = vmax.f32 %v1377, %v1378
    %v1380 = vrot.slane %v1379, 1
    %v1381 = vmax.f32 %v1379, %v1380
    %v1382 = vsel %vm448, %v1240, -inf
    %v1383 = vrot.slane %v1382, 4
    %v1384 = vmax.f32 %v1382, %v1383
    %v1385 = vrot.slane %v1384, 2
    %v1386 = vmax.f32 %v1384, %v1385
    %v1387 = vrot.slane %v1386, 1
    %v1388 = vmax.f32 %v1386, %v1387
    %v1389 = vsel %vm448, %v1242, -inf
    %v1390 = vrot.slane %v1389, 4
    %v1391 = vmax.f32 %v1389, %v1390
    %v1392 = vrot.slane %v1391, 2
    %v1393 = vmax.f32 %v1391, %v1392
    %v1394 = vrot.slane %v1393, 1
    %v1395 = vmax.f32 %v1393, %v1394
    %v1396 = vsel %vm448, %v1244, -inf
    %v1397 = vrot.slane %v1396, 4
    %v1398 = vmax.f32 %v1396, %v1397
    %v1399 = vrot.slane %v1398, 2
    %v1400 = vmax.f32 %v1398, %v1399
    %v1401 = vrot.slane %v1400, 1
    %v1402 = vmax.f32 %v1400, %v1401
    %v1403 = vsel %vm448, %v1246, -inf
    %v1404 = vrot.slane %v1403, 4
    %v1405 = vmax.f32 %v1403, %v1404
    %v1406 = vrot.slane %v1405, 2
    %v1407 = vmax.f32 %v1405, %v1406
    %v1408 = vrot.slane %v1407, 1
    %v1409 = vmax.f32 %v1407, %v1408
    %v1410 = vsel %vm448, %v1248, -inf
    %v1411 = vrot.slane %v1410, 4
    %v1412 = vmax.f32 %v1410, %v1411
    %v1413 = vrot.slane %v1412, 2
    %v1414 = vmax.f32 %v1412, %v1413
    %v1415 = vrot.slane %v1414, 1
    %v1416 = vmax.f32 %v1414, %v1415
    %v1417 = vsel %vm448, %v1346, -inf
    %v1418 = vrot.slane %v1417, 4
    %v1419 = vmax.f32 %v1417, %v1418
    %v1420 = vrot.slane %v1419, 2
    %v1421 = vmax.f32 %v1419, %v1420
    %v1422 = vrot.slane %v1421, 1
    %v1423 = vmax.f32 %v1421, %v1422
    %v1424 = vsel %vm448, %v1348, -inf
    %v1425 = vrot.slane %v1424, 4
    %v1426 = vmax.f32 %v1424, %v1425
    %v1427 = vrot.slane %v1426, 2
    %v1428 = vmax.f32 %v1426, %v1427
    %v1429 = vrot.slane %v1428, 1
    %v1430 = vmax.f32 %v1428, %v1429
    %v1431 = vsel %vm448, %v1350, -inf
    %v1432 = vrot.slane %v1431, 4
    %v1433 = vmax.f32 %v1431, %v1432
    %v1434 = vrot.slane %v1433, 2
    %v1435 = vmax.f32 %v1433, %v1434
    %v1436 = vrot.slane %v1435, 1
    %v1437 = vmax.f32 %v1435, %v1436
    %v1438 = vsel %vm448, %v1352, -inf
    %v1439 = vrot.slane %v1438, 4
    %v1440 = vmax.f32 %v1438, %v1439
    %v1441 = vrot.slane %v1440, 2
    %v1442 = vmax.f32 %v1440, %v1441
    %v1443 = vrot.slane %v1442, 1
    %v1444 = vmax.f32 %v1442, %v1443
    %v1445 = vsel %vm448, %v1354, -inf
    %v1446 = vrot.slane %v1445, 4
    %v1447 = vmax.f32 %v1445, %v1446
    %v1448 = vrot.slane %v1447, 2
    %v1449 = vmax.f32 %v1447, %v1448
    %v1450 = vrot.slane %v1449, 1
    %v1451 = vmax.f32 %v1449, %v1450
    %v1452 = vsel %vm448, %v1356, -inf
    %v1453 = vrot.slane %v1452, 4
    %v1454 = vmax.f32 %v1452, %v1453
    %v1455 = vrot.slane %v1454, 2
    %v1456 = vmax.f32 %v1454, %v1455
    %v1457 = vrot.slane %v1456, 1
    %v1458 = vmax.f32 %v1456, %v1457
    %v1459 = vsel %vm448, %v1358, -inf
    %v1460 = vrot.slane %v1459, 4
    %v1461 = vmax.f32 %v1459, %v1460
    %v1462 = vrot.slane %v1461, 2
    %v1463 = vmax.f32 %v1461, %v1462
    %v1464 = vrot.slane %v1463, 1
    %v1465 = vmax.f32 %v1463, %v1464
    %v1466 = vsel %vm448, %v1360, -inf
    %v1467 = vrot.slane %v1466, 4
    %v1468 = vmax.f32 %v1466, %v1467
    %v1469 = vrot.slane %v1468, 2
    %v1470 = vmax.f32 %v1468, %v1469
    %v1471 = vrot.slane %v1470, 1
    %v1472 = vmax.f32 %v1470, %v1471
    %1473 = vmax.xlane.f32.xlu0 %v1361
    %v1474 = vpop.xlane.xlu0 %1473
    %1475 = vmax.xlane.f32.xlu0 %v1368
    %v1476 = vpop.xlane.xlu0 %1475
    %1477 = vmax.xlane.f32.xlu0 %v1375
    %v1478 = vpop.xlane.xlu0 %1477
    %1479 = vmax.xlane.f32.xlu0 %v1382
    %v1480 = vpop.xlane.xlu0 %1479
    %1481 = vmax.xlane.f32.xlu0 %v1389
    %v1482 = vpop.xlane.xlu0 %1481
    %1483 = vmax.xlane.f32.xlu0 %v1396
    %v1484 = vpop.xlane.xlu0 %1483
    %1485 = vmax.xlane.f32.xlu0 %v1403
    %v1486 = vpop.xlane.xlu0 %1485
    %1487 = vmax.xlane.f32.xlu0 %v1410
    %v1488 = vpop.xlane.xlu0 %1487
    %1489 = vmax.xlane.f32.xlu0 %v1417
    %v1490 = vpop.xlane.xlu0 %1489
    %1491 = vmax.xlane.f32.xlu0 %v1424
    %v1492 = vpop.xlane.xlu0 %1491
    %1493 = vmax.xlane.f32.xlu0 %v1431
    %v1494 = vpop.xlane.xlu0 %1493
    %1495 = vmax.xlane.f32.xlu0 %v1438
    %v1496 = vpop.xlane.xlu0 %1495
    %1497 = vmax.xlane.f32.xlu0 %v1445
    %v1498 = vpop.xlane.xlu0 %1497
    %1499 = vmax.xlane.f32.xlu0 %v1452
    %v1500 = vpop.xlane.xlu0 %1499
    %1501 = vmax.xlane.f32.xlu0 %v1459
    %v1502 = vpop.xlane.xlu0 %1501
    %1503 = vmax.xlane.f32.xlu0 %v1466
    %v1504 = vpop.xlane.xlu0 %1503
    %v1505 = vrot.slane %v1381, 4
    %v1506 = vsel %vm1137, %v1505, %v1367
    %v1507 = vrot.slane %v1367, 4
    %v1508 = vsel %vm1137, %v1381, %v1507
    %v1510 = vunpack.c.l.s4 1983009808
    %v1511 = vunpack.c.0.s8 %v1510
    %v1512 = vperm.slane %v1506, %v1511
    %v1514 = vunpack.c.l.s4 1983009808
    %v1515 = vunpack.c.0.s8 %v1514
    %v1516 = vperm.slane %v1508, %v1515
    %v1517 = vrot.slane %v1388, 4
    %v1518 = vsel %vm1137, %v1517, %v1374
    %v1519 = vrot.slane %v1374, 4
    %v1520 = vsel %vm1137, %v1388, %v1519
    %v1522 = vunpack.c.l.s4 1983009808
    %v1523 = vunpack.c.0.s8 %v1522
    %v1524 = vperm.slane %v1518, %v1523
    %v1526 = vunpack.c.l.s4 1983009808
    %v1527 = vunpack.c.0.s8 %v1526
    %v1528 = vperm.slane %v1520, %v1527
    %v1529 = vrot.slane %v1409, 4
    %v1530 = vsel %vm1137, %v1529, %v1395
    %v1531 = vrot.slane %v1395, 4
    %v1532 = vsel %vm1137, %v1409, %v1531
    %v1534 = vunpack.c.l.s4 1983009808
    %v1535 = vunpack.c.0.s8 %v1534
    %v1536 = vperm.slane %v1530, %v1535
    %v1538 = vunpack.c.l.s4 1983009808
    %v1539 = vunpack.c.0.s8 %v1538
    %v1540 = vperm.slane %v1532, %v1539
    %v1541 = vrot.slane %v1416, 4
    %v1542 = vsel %vm1137, %v1541, %v1402
    %v1543 = vrot.slane %v1402, 4
    %v1544 = vsel %vm1137, %v1416, %v1543
    %v1546 = vunpack.c.l.s4 1983009808
    %v1547 = vunpack.c.0.s8 %v1546
    %v1548 = vperm.slane %v1542, %v1547
    %v1550 = vunpack.c.l.s4 1983009808
    %v1551 = vunpack.c.0.s8 %v1550
    %v1552 = vperm.slane %v1544, %v1551
    %v1553 = vrot.slane %v1524, 4
    %v1554 = vsel %vm1137, %v1553, %v1512
    %v1555 = vrot.slane %v1512, 4
    %v1556 = vsel %vm1137, %v1524, %v1555
    %v1558 = vunpack.c.l.s4 1934713408
    %v1559 = vunpack.c.0.s8 %v1558
    %v1560 = vperm.slane %v1554, %v1559
    %v1562 = vunpack.c.l.s4 1934713408
    %v1563 = vunpack.c.0.s8 %v1562
    %v1564 = vperm.slane %v1556, %v1563
    %v1565 = vrot.slane %v1528, 4
    %v1566 = vsel %vm1137, %v1565, %v1516
    %v1567 = vrot.slane %v1516, 4
    %v1568 = vsel %vm1137, %v1528, %v1567
    %v1570 = vunpack.c.l.s4 1934713408
    %v1571 = vunpack.c.0.s8 %v1570
    %v1572 = vperm.slane %v1566, %v1571
    %v1574 = vunpack.c.l.s4 1934713408
    %v1575 = vunpack.c.0.s8 %v1574
    %v1576 = vperm.slane %v1568, %v1575
    %v1577 = vrot.slane %v1548, 4
    %v1578 = vsel %vm1137, %v1577, %v1536
    %v1579 = vrot.slane %v1536, 4
    %v1580 = vsel %vm1137, %v1548, %v1579
    %v1582 = vunpack.c.l.s4 1934713408
    %v1583 = vunpack.c.0.s8 %v1582
    %v1584 = vperm.slane %v1578, %v1583
    %v1586 = vunpack.c.l.s4 1934713408
    %v1587 = vunpack.c.0.s8 %v1586
    %v1588 = vperm.slane %v1580, %v1587
    %v1589 = vrot.slane %v1552, 4
    %v1590 = vsel %vm1137, %v1589, %v1540
    %v1591 = vrot.slane %v1540, 4
    %v1592 = vsel %vm1137, %v1552, %v1591
    %v1594 = vunpack.c.l.s4 1934713408
    %v1595 = vunpack.c.0.s8 %v1594
    %v1596 = vperm.slane %v1590, %v1595
    %v1598 = vunpack.c.l.s4 1934713408
    %v1599 = vunpack.c.0.s8 %v1598
    %v1600 = vperm.slane %v1592, %v1599
    %v1601 = vrot.slane %v1584, 4
    %v1602 = vsel %vm1137, %v1601, %v1560
    %v1603 = vrot.slane %v1560, 4
    %v1604 = vsel %vm1137, %v1584, %v1603
    %v1605 = vrot.slane %v1588, 4
    %v1606 = vsel %vm1137, %v1605, %v1564
    %v1607 = vrot.slane %v1564, 4
    %v1608 = vsel %vm1137, %v1588, %v1607
    %v1609 = vrot.slane %v1596, 4
    %v1610 = vsel %vm1137, %v1609, %v1572
    %v1611 = vrot.slane %v1572, 4
    %v1612 = vsel %vm1137, %v1596, %v1611
    %v1613 = vrot.slane %v1600, 4
    %v1614 = vsel %vm1137, %v1613, %v1576
    %v1615 = vrot.slane %v1576, 4
    %v1616 = vsel %vm1137, %v1600, %v1615
    %v1617 = vrot.slane %v1437, 4
    %v1618 = vsel %vm1137, %v1617, %v1423
    %v1619 = vrot.slane %v1423, 4
    %v1620 = vsel %vm1137, %v1437, %v1619
    %v1622 = vunpack.c.l.s4 1983009808
    %v1623 = vunpack.c.0.s8 %v1622
    %v1624 = vperm.slane %v1618, %v1623
    %v1626 = vunpack.c.l.s4 1983009808
    %v1627 = vunpack.c.0.s8 %v1626
    %v1628 = vperm.slane %v1620, %v1627
    %v1629 = vrot.slane %v1444, 4
    %v1630 = vsel %vm1137, %v1629, %v1430
    %v1631 = vrot.slane %v1430, 4
    %v1632 = vsel %vm1137, %v1444, %v1631
    %v1634 = vunpack.c.l.s4 1983009808
    %v1635 = vunpack.c.0.s8 %v1634
    %v1636 = vperm.slane %v1630, %v1635
    %v1638 = vunpack.c.l.s4 1983009808
    %v1639 = vunpack.c.0.s8 %v1638
    %v1640 = vperm.slane %v1632, %v1639
    %v1641 = vrot.slane %v1465, 4
    %v1642 = vsel %vm1137, %v1641, %v1451
    %v1643 = vrot.slane %v1451, 4
    %v1644 = vsel %vm1137, %v1465, %v1643
    %v1646 = vunpack.c.l.s4 1983009808
    %v1647 = vunpack.c.0.s8 %v1646
    %v1648 = vperm.slane %v1642, %v1647
    %v1650 = vunpack.c.l.s4 1983009808
    %v1651 = vunpack.c.0.s8 %v1650
    %v1652 = vperm.slane %v1644, %v1651
    %v1653 = vrot.slane %v1472, 4
    %v1654 = vsel %vm1137, %v1653, %v1458
    %v1655 = vrot.slane %v1458, 4
    %v1656 = vsel %vm1137, %v1472, %v1655
    %v1658 = vunpack.c.l.s4 1983009808
    %v1659 = vunpack.c.0.s8 %v1658
    %v1660 = vperm.slane %v1654, %v1659
    %v1662 = vunpack.c.l.s4 1983009808
    %v1663 = vunpack.c.0.s8 %v1662
    %v1664 = vperm.slane %v1656, %v1663
    %v1665 = vrot.slane %v1636, 4
    %v1666 = vsel %vm1137, %v1665, %v1624
    %v1667 = vrot.slane %v1624, 4
    %v1668 = vsel %vm1137, %v1636, %v1667
    %v1670 = vunpack.c.l.s4 1934713408
    %v1671 = vunpack.c.0.s8 %v1670
    %v1672 = vperm.slane %v1666, %v1671
    %v1674 = vunpack.c.l.s4 1934713408
    %v1675 = vunpack.c.0.s8 %v1674
    %v1676 = vperm.slane %v1668, %v1675
    %v1677 = vrot.slane %v1640, 4
    %v1678 = vsel %vm1137, %v1677, %v1628
    %v1679 = vrot.slane %v1628, 4
    %v1680 = vsel %vm1137, %v1640, %v1679
    %v1682 = vunpack.c.l.s4 1934713408
    %v1683 = vunpack.c.0.s8 %v1682
    %v1684 = vperm.slane %v1678, %v1683
    %v1686 = vunpack.c.l.s4 1934713408
    %v1687 = vunpack.c.0.s8 %v1686
    %v1688 = vperm.slane %v1680, %v1687
    %v1689 = vrot.slane %v1660, 4
    %v1690 = vsel %vm1137, %v1689, %v1648
    %v1691 = vrot.slane %v1648, 4
    %v1692 = vsel %vm1137, %v1660, %v1691
    %v1694 = vunpack.c.l.s4 1934713408
    %v1695 = vunpack.c.0.s8 %v1694
    %v1696 = vperm.slane %v1690, %v1695
    %v1698 = vunpack.c.l.s4 1934713408
    %v1699 = vunpack.c.0.s8 %v1698
    %v1700 = vperm.slane %v1692, %v1699
    %v1701 = vrot.slane %v1664, 4
    %v1702 = vsel %vm1137, %v1701, %v1652
    %v1703 = vrot.slane %v1652, 4
    %v1704 = vsel %vm1137, %v1664, %v1703
    %v1706 = vunpack.c.l.s4 1934713408
    %v1707 = vunpack.c.0.s8 %v1706
    %v1708 = vperm.slane %v1702, %v1707
    %v1710 = vunpack.c.l.s4 1934713408
    %v1711 = vunpack.c.0.s8 %v1710
    %v1712 = vperm.slane %v1704, %v1711
    %v1713 = vrot.slane %v1696, 4
    %v1714 = vsel %vm1137, %v1713, %v1672
    %v1715 = vrot.slane %v1672, 4
    %v1716 = vsel %vm1137, %v1696, %v1715
    %v1717 = vrot.slane %v1700, 4
    %v1718 = vsel %vm1137, %v1717, %v1676
    %v1719 = vrot.slane %v1676, 4
    %v1720 = vsel %vm1137, %v1700, %v1719
    %v1721 = vrot.slane %v1708, 4
    %v1722 = vsel %vm1137, %v1721, %v1684
    %v1723 = vrot.slane %v1684, 4
    %v1724 = vsel %vm1137, %v1708, %v1723
    %v1725 = vrot.slane %v1712, 4
    %v1726 = vsel %vm1137, %v1725, %v1688
    %v1727 = vrot.slane %v1688, 4
    %v1728 = vsel %vm1137, %v1712, %v1727
    %1731 = vrot.lane.b32.xlu0 %v1604, 16
    %v1732 = vpop.permute.xlu0 %1731
    %1733 = vrot.lane.b32.xlu0 %v1716, 16
    %v1734 = vpop.permute.xlu0 %1733
    %1739 = vrot.lane.b32.xlu0 %v1606, 32
    %v1740 = vpop.permute.xlu0 %1739
    %1741 = vrot.lane.b32.xlu0 %v1718, 32
    %v1742 = vpop.permute.xlu0 %1741
    %1747 = vrot.lane.b32.xlu0 %v1608, 48
    %v1748 = vpop.permute.xlu0 %1747
    %1749 = vrot.lane.b32.xlu0 %v1720, 48
    %v1750 = vpop.permute.xlu0 %1749
    %1755 = vrot.lane.b32.xlu0 %v1610, 64
    %v1756 = vpop.permute.xlu0 %1755
    %1757 = vrot.lane.b32.xlu0 %v1722, 64
    %v1758 = vpop.permute.xlu0 %1757
    %1763 = vrot.lane.b32.xlu0 %v1612, 80
    %v1764 = vpop.permute.xlu0 %1763
    %1765 = vrot.lane.b32.xlu0 %v1724, 80
    %v1766 = vpop.permute.xlu0 %1765
    %1771 = vrot.lane.b32.xlu0 %v1614, 96
    %v1772 = vpop.permute.xlu0 %1771
    %1773 = vrot.lane.b32.xlu0 %v1726, 96
    %v1774 = vpop.permute.xlu0 %1773
    %1779 = vrot.lane.b32.xlu0 %v1616, 112
    %v1780 = vpop.permute.xlu0 %1779
    %1781 = vrot.lane.b32.xlu0 %v1728, 112
    %v1782 = vpop.permute.xlu0 %1781
    %v1785 = vsel %vm448, %v1602, %v1732
    %v1786 = vsel %vm448, %v1714, %v1734
    %v1787 = vsel %vm754, %v1785, %v1740
    %v1788 = vsel %vm754, %v1786, %v1742
    %vm1789 = vcmask 392192
    %v1790 = vsel %vm1789, %v1787, %v1748
    %v1791 = vsel %vm1789, %v1788, %v1750
    %vm1792 = vcmask 523264
    %v1793 = vsel %vm1792, %v1790, %v1756
    %v1794 = vsel %vm1792, %v1791, %v1758
    %vm1795 = vcmask 654336
    %v1796 = vsel %vm1795, %v1793, %v1764
    %v1797 = vsel %vm1795, %v1794, %v1766
    %vm1798 = vcmask 785408
    %v1799 = vsel %vm1798, %v1796, %v1772
    %v1800 = vsel %vm1798, %v1797, %v1774
    %vm1801 = vcmask 916480
    %v1802 = vsel %vm1801, %v1799, %v1780
    %v1803 = vsel %vm1801, %v1800, %v1782
    %1804 = vst [vmem:[#allocation2] sm:$0xff] %v1802
    %1805 = vst [vmem:[#allocation2 + $0x8] sm:$0xff] %v1803
    %v1806 = vrot.slane %v1478, 4
    %v1807 = vsel %vm1137, %v1806, %v1474
    %v1808 = vrot.slane %v1474, 4
    %v1809 = vsel %vm1137, %v1478, %v1808
    %v1811 = vunpack.c.l.s4 1983009808
    %v1812 = vunpack.c.0.s8 %v1811
    %v1813 = vperm.slane %v1807, %v1812
    %v1815 = vunpack.c.l.s4 1983009808
    %v1816 = vunpack.c.0.s8 %v1815
    %v1817 = vperm.slane %v1809, %v1816
    %v1818 = vrot.slane %v1480, 4
    %v1819 = vsel %vm1137, %v1818, %v1476
    %v1820 = vrot.slane %v1476, 4
    %v1821 = vsel %vm1137, %v1480, %v1820
    %v1823 = vunpack.c.l.s4 1983009808
    %v1824 = vunpack.c.0.s8 %v1823
    %v1825 = vperm.slane %v1819, %v1824
    %v1827 = vunpack.c.l.s4 1983009808
    %v1828 = vunpack.c.0.s8 %v1827
    %v1829 = vperm.slane %v1821, %v1828
    %v1830 = vrot.slane %v1486, 4
    %v1831 = vsel %vm1137, %v1830, %v1482
    %v1832 = vrot.slane %v1482, 4
    %v1833 = vsel %vm1137, %v1486, %v1832
    %v1835 = vunpack.c.l.s4 1983009808
    %v1836 = vunpack.c.0.s8 %v1835
    %v1837 = vperm.slane %v1831, %v1836
    %v1839 = vunpack.c.l.s4 1983009808
    %v1840 = vunpack.c.0.s8 %v1839
    %v1841 = vperm.slane %v1833, %v1840
    %v1842 = vrot.slane %v1488, 4
    %v1843 = vsel %vm1137, %v1842, %v1484
    %v1844 = vrot.slane %v1484, 4
    %v1845 = vsel %vm1137, %v1488, %v1844
    %v1847 = vunpack.c.l.s4 1983009808
    %v1848 = vunpack.c.0.s8 %v1847
    %v1849 = vperm.slane %v1843, %v1848
    %v1851 = vunpack.c.l.s4 1983009808
    %v1852 = vunpack.c.0.s8 %v1851
    %v1853 = vperm.slane %v1845, %v1852
    %v1854 = vrot.slane %v1825, 4
    %v1855 = vsel %vm1137, %v1854, %v1813
    %v1856 = vrot.slane %v1813, 4
    %v1857 = vsel %vm1137, %v1825, %v1856
    %v1859 = vunpack.c.l.s4 1934713408
    %v1860 = vunpack.c.0.s8 %v1859
    %v1861 = vperm.slane %v1855, %v1860
    %v1863 = vunpack.c.l.s4 1934713408
    %v1864 = vunpack.c.0.s8 %v1863
    %v1865 = vperm.slane %v1857, %v1864
    %v1866 = vrot.slane %v1829, 4
    %v1867 = vsel %vm1137, %v1866, %v1817
    %v1868 = vrot.slane %v1817, 4
    %v1869 = vsel %vm1137, %v1829, %v1868
    %v1871 = vunpack.c.l.s4 1934713408
    %v1872 = vunpack.c.0.s8 %v1871
    %v1873 = vperm.slane %v1867, %v1872
    %v1875 = vunpack.c.l.s4 1934713408
    %v1876 = vunpack.c.0.s8 %v1875
    %v1877 = vperm.slane %v1869, %v1876
    %v1878 = vrot.slane %v1849, 4
    %v1879 = vsel %vm1137, %v1878, %v1837
    %v1880 = vrot.slane %v1837, 4
    %v1881 = vsel %vm1137, %v1849, %v1880
    %v1883 = vunpack.c.l.s4 1934713408
    %v1884 = vunpack.c.0.s8 %v1883
    %v1885 = vperm.slane %v1879, %v1884
    %v1887 = vunpack.c.l.s4 1934713408
    %v1888 = vunpack.c.0.s8 %v1887
    %v1889 = vperm.slane %v1881, %v1888
    %v1890 = vrot.slane %v1853, 4
    %v1891 = vsel %vm1137, %v1890, %v1841
    %v1892 = vrot.slane %v1841, 4
    %v1893 = vsel %vm1137, %v1853, %v1892
    %v1895 = vunpack.c.l.s4 1934713408
    %v1896 = vunpack.c.0.s8 %v1895
    %v1897 = vperm.slane %v1891, %v1896
    %v1899 = vunpack.c.l.s4 1934713408
    %v1900 = vunpack.c.0.s8 %v1899
    %v1901 = vperm.slane %v1893, %v1900
    %v1902 = vrot.slane %v1885, 4
    %v1903 = vsel %vm1137, %v1902, %v1861
    %v1904 = vrot.slane %v1861, 4
    %v1905 = vsel %vm1137, %v1885, %v1904
    %v1906 = vrot.slane %v1889, 4
    %v1907 = vsel %vm1137, %v1906, %v1865
    %v1908 = vrot.slane %v1865, 4
    %v1909 = vsel %vm1137, %v1889, %v1908
    %v1910 = vrot.slane %v1897, 4
    %v1911 = vsel %vm1137, %v1910, %v1873
    %v1912 = vrot.slane %v1873, 4
    %v1913 = vsel %vm1137, %v1897, %v1912
    %v1914 = vrot.slane %v1901, 4
    %v1915 = vsel %vm1137, %v1914, %v1877
    %v1916 = vrot.slane %v1877, 4
    %v1917 = vsel %vm1137, %v1901, %v1916
    %v1918 = vrot.slane %v1494, 4
    %v1919 = vsel %vm1137, %v1918, %v1490
    %v1920 = vrot.slane %v1490, 4
    %v1921 = vsel %vm1137, %v1494, %v1920
    %v1923 = vunpack.c.l.s4 1983009808
    %v1924 = vunpack.c.0.s8 %v1923
    %v1925 = vperm.slane %v1919, %v1924
    %v1927 = vunpack.c.l.s4 1983009808
    %v1928 = vunpack.c.0.s8 %v1927
    %v1929 = vperm.slane %v1921, %v1928
    %v1930 = vrot.slane %v1496, 4
    %v1931 = vsel %vm1137, %v1930, %v1492
    %v1932 = vrot.slane %v1492, 4
    %v1933 = vsel %vm1137, %v1496, %v1932
    %v1935 = vunpack.c.l.s4 1983009808
    %v1936 = vunpack.c.0.s8 %v1935
    %v1937 = vperm.slane %v1931, %v1936
    %v1939 = vunpack.c.l.s4 1983009808
    %v1940 = vunpack.c.0.s8 %v1939
    %v1941 = vperm.slane %v1933, %v1940
    %v1942 = vrot.slane %v1502, 4
    %v1943 = vsel %vm1137, %v1942, %v1498
    %v1944 = vrot.slane %v1498, 4
    %v1945 = vsel %vm1137, %v1502, %v1944
    %v1947 = vunpack.c.l.s4 1983009808
    %v1948 = vunpack.c.0.s8 %v1947
    %v1949 = vperm.slane %v1943, %v1948
    %v1951 = vunpack.c.l.s4 1983009808
    %v1952 = vunpack.c.0.s8 %v1951
    %v1953 = vperm.slane %v1945, %v1952
    %v1954 = vrot.slane %v1504, 4
    %v1955 = vsel %vm1137, %v1954, %v1500
    %v1956 = vrot.slane %v1500, 4
    %v1957 = vsel %vm1137, %v1504, %v1956
    %v1959 = vunpack.c.l.s4 1983009808
    %v1960 = vunpack.c.0.s8 %v1959
    %v1961 = vperm.slane %v1955, %v1960
    %v1963 = vunpack.c.l.s4 1983009808
    %v1964 = vunpack.c.0.s8 %v1963
    %v1965 = vperm.slane %v1957, %v1964
    %v1966 = vrot.slane %v1937, 4
    %v1967 = vsel %vm1137, %v1966, %v1925
    %v1968 = vrot.slane %v1925, 4
    %v1969 = vsel %vm1137, %v1937, %v1968
    %v1971 = vunpack.c.l.s4 1934713408
    %v1972 = vunpack.c.0.s8 %v1971
    %v1973 = vperm.slane %v1967, %v1972
    %v1975 = vunpack.c.l.s4 1934713408
    %v1976 = vunpack.c.0.s8 %v1975
    %v1977 = vperm.slane %v1969, %v1976
    %v1978 = vrot.slane %v1941, 4
    %v1979 = vsel %vm1137, %v1978, %v1929
    %v1980 = vrot.slane %v1929, 4
    %v1981 = vsel %vm1137, %v1941, %v1980
    %v1983 = vunpack.c.l.s4 1934713408
    %v1984 = vunpack.c.0.s8 %v1983
    %v1985 = vperm.slane %v1979, %v1984
    %v1987 = vunpack.c.l.s4 1934713408
    %v1988 = vunpack.c.0.s8 %v1987
    %v1989 = vperm.slane %v1981, %v1988
    %v1990 = vrot.slane %v1961, 4
    %v1991 = vsel %vm1137, %v1990, %v1949
    %v1992 = vrot.slane %v1949, 4
    %v1993 = vsel %vm1137, %v1961, %v1992
    %v1995 = vunpack.c.l.s4 1934713408
    %v1996 = vunpack.c.0.s8 %v1995
    %v1997 = vperm.slane %v1991, %v1996
    %v1999 = vunpack.c.l.s4 1934713408
    %v2000 = vunpack.c.0.s8 %v1999
    %v2001 = vperm.slane %v1993, %v2000
    %v2002 = vrot.slane %v1965, 4
    %v2003 = vsel %vm1137, %v2002, %v1953
    %v2004 = vrot.slane %v1953, 4
    %v2005 = vsel %vm1137, %v1965, %v2004
    %v2007 = vunpack.c.l.s4 1934713408
    %v2008 = vunpack.c.0.s8 %v2007
    %v2009 = vperm.slane %v2003, %v2008
    %v2011 = vunpack.c.l.s4 1934713408
    %v2012 = vunpack.c.0.s8 %v2011
    %v2013 = vperm.slane %v2005, %v2012
    %v2014 = vrot.slane %v1997, 4
    %v2015 = vsel %vm1137, %v2014, %v1973
    %v2016 = vrot.slane %v1973, 4
    %v2017 = vsel %vm1137, %v1997, %v2016
    %v2018 = vrot.slane %v2001, 4
    %v2019 = vsel %vm1137, %v2018, %v1977
    %v2020 = vrot.slane %v1977, 4
    %v2021 = vsel %vm1137, %v2001, %v2020
    %v2022 = vrot.slane %v2009, 4
    %v2023 = vsel %vm1137, %v2022, %v1985
    %v2024 = vrot.slane %v1985, 4
    %v2025 = vsel %vm1137, %v2009, %v2024
    %v2026 = vrot.slane %v2013, 4
    %v2027 = vsel %vm1137, %v2026, %v1989
    %v2028 = vrot.slane %v1989, 4
    %v2029 = vsel %vm1137, %v2013, %v2028
    %2032 = vrot.lane.b32.xlu0 %v1905, 16
    %v2033 = vpop.permute.xlu0 %2032
    %2034 = vrot.lane.b32.xlu0 %v2017, 16
    %v2035 = vpop.permute.xlu0 %2034
    %2040 = vrot.lane.b32.xlu0 %v1907, 32
    %v2041 = vpop.permute.xlu0 %2040
    %2042 = vrot.lane.b32.xlu0 %v2019, 32
    %v2043 = vpop.permute.xlu0 %2042
    %2048 = vrot.lane.b32.xlu0 %v1909, 48
    %v2049 = vpop.permute.xlu0 %2048
    %2050 = vrot.lane.b32.xlu0 %v2021, 48
    %v2051 = vpop.permute.xlu0 %2050
    %2056 = vrot.lane.b32.xlu0 %v1911, 64
    %v2057 = vpop.permute.xlu0 %2056
    %2058 = vrot.lane.b32.xlu0 %v2023, 64
    %v2059 = vpop.permute.xlu0 %2058
    %2064 = vrot.lane.b32.xlu0 %v1913, 80
    %v2065 = vpop.permute.xlu0 %2064
    %2066 = vrot.lane.b32.xlu0 %v2025, 80
    %v2067 = vpop.permute.xlu0 %2066
    %2072 = vrot.lane.b32.xlu0 %v1915, 96
    %v2073 = vpop.permute.xlu0 %2072
    %2074 = vrot.lane.b32.xlu0 %v2027, 96
    %v2075 = vpop.permute.xlu0 %2074
    %2080 = vrot.lane.b32.xlu0 %v1917, 112
    %v2081 = vpop.permute.xlu0 %2080
    %2082 = vrot.lane.b32.xlu0 %v2029, 112
    %v2083 = vpop.permute.xlu0 %2082
    %v2086 = vsel %vm448, %v1903, %v2033
    %v2087 = vsel %vm448, %v2015, %v2035
    %v2088 = vsel %vm754, %v2086, %v2041
    %v2089 = vsel %vm754, %v2087, %v2043
    %v2090 = vsel %vm1789, %v2088, %v2049
    %v2091 = vsel %vm1789, %v2089, %v2051
    %v2092 = vsel %vm1792, %v2090, %v2057
    %v2093 = vsel %vm1792, %v2091, %v2059
    %v2094 = vsel %vm1795, %v2092, %v2065
    %v2095 = vsel %vm1795, %v2093, %v2067
    %v2096 = vsel %vm1798, %v2094, %v2073
    %v2097 = vsel %vm1798, %v2095, %v2075
    %v2098 = vsel %vm1801, %v2096, %v2081
    %v2099 = vsel %vm1801, %v2097, %v2083
    %2100 = vst [vmem:[#allocation4] sm:$0xff] %v2098
    %2101 = vst [vmem:[#allocation4 + $0x8] sm:$0xff] %v2099
    // Predicated region
    $region70: #{tpu_custom_call.1} parent=1 // pred_check
      _
    $region71: #{tpu_custom_call.1} parent=1 // pred_check_branch
      %2103 = sbr.rel (0) target = $region73
    $region72: #{tpu_custom_call.1} parent=1 // pred_region
      %2105 = vsyncadd [#allocation3], 0
      %s2106 = sshll.u32 [#allocation2], 4
      %s2107 = int_to_ptr.vmem [resolvable:$true] %s2106
      %s2108 = sshll.u32 %s17, 4
      %s2109 = int_to_ptr.hbm [resolvable:$true] %s2108
      %2114 = dma.vmem_to_hbm [thread:$0]  %s2107, 256, %s2109, [#allocation3], 128, 128, 8
    $region73: #{tpu_custom_call.1} parent=1 // pred_fallthru
      _
    // Predicated region
    $region74: #{tpu_custom_call.1} parent=1 // pred_check
      _
    $region75: #{tpu_custom_call.1} parent=1 // pred_check_branch
      %2116 = sbr.rel (0) target = $region77
    $region76: #{tpu_custom_call.1} parent=1 // pred_region
      %2118 = vsyncadd [#allocation5], 0
      %s2119 = sshll.u32 [#allocation4], 4
      %s2120 = int_to_ptr.vmem [resolvable:$true] %s2119
      %s2121 = sshll.u32 %s18, 4
      %s2122 = int_to_ptr.hbm [resolvable:$true] %s2121
      %2127 = dma.vmem_to_hbm [thread:$0]  %s2120, 256, %s2122, [#allocation5], 128, 128, 8
    $region77: #{tpu_custom_call.1} parent=1 // pred_fallthru
      _
    // Predicated region
    $region78: #{tpu_custom_call.1} parent=1 // pred_check
      _
    $region79: #{tpu_custom_call.1} parent=1 // pred_check_branch
      %2129 = sbr.rel (0) target = $region81
    $region80: #{tpu_custom_call.1} parent=1 // pred_region
      %2131 = dma.done [#allocation3], 256
    $region81: #{tpu_custom_call.1} parent=1 // pred_fallthru
      _
    // Predicated region
    $region82: #{tpu_custom_call.1} parent=1 // pred_check
      _
    $region83: #{tpu_custom_call.1} parent=1 // pred_check_branch
      %2133 = sbr.rel (0) target = $region85
    $region84: #{tpu_custom_call.1} parent=1 // pred_region
      %2135 = dma.done [#allocation5], 256
    $region85: #{tpu_custom_call.1} parent=1 // pred_fallthru
      _
    %2136 = vsyncpa [#allocation3], 1
    %2137 = vsyncpa [#allocation5], 1

</llo_original>
